<compile_context>
chip_gen: v7x
topology: tpu7x:2x2x1
jax: 0.10.0
libtpu: 0.0.40
codegen_flags: <defaults>
</compile_context>

<pallas_src>
import functools

import jax
import jax.numpy as jnp
from jax.experimental import pallas as pl
from jax.experimental.pallas import tpu as pltpu

_LANES = 128                              # pad channel dims to this lane width
_SUBLANES_BF16 = 16                       # bf16 packs 16 rows per sublane group
_ADJ_RESIDENT_BUDGET = 24 * 2 ** 20       # keep adjacency fully resident below this
_ADJ_TILE_ROWS = 512                      # row-slab size when adjacency is tiled


def _round_up(x, m):
    return (x + m - 1) // m * m


# ----------------------------------------------------------------------------
# Fused Pallas kernel: lifting -> n_layers x GnnLayer -> projection
# One grid step = (layer l, adjacency row-tile r).
# ----------------------------------------------------------------------------
def _gnn_kernel(x_ref, adj_ref,
                lift_w_ref, lift_b_ref,
                w1_ref, b1_ref, w2_ref, b2_ref,
                proj_w_ref, proj_b_ref,
                o_ref,
                x_sc, m_sc,
                *, tile_rows, inv_k):
    """x:(Np,Cp)bf16  adj slab:(T,Np)bf16{0,1}  weights bf16 / biases f32.

    x_sc:(Np,Hp)f32  activation carried across layers (VMEM scratch)
    m_sc:(Np,Hp)bf16 per-layer messages (VMEM scratch)
    o:(Np,Op)bf16    resident output block, DMA'd out once at grid completion
    """
    l = pl.program_id(0)
    r = pl.program_id(1)
    n_layers = pl.num_programs(0)

    # Lifting layer: once, before the first layer's message pass.
    @pl.when(jnp.logical_and(l == 0, r == 0))
    def _lift():
        x_sc[...] = (jnp.dot(x_ref[...], lift_w_ref[...],
                             preferred_element_type=jnp.float32)
                     + lift_b_ref[...])

    # Message pass for layer l over the full node set, once per layer.
    # TODO(synk): jax.nn.gelu defaults to the tanh approximation; PyTorch
    # nn.GELU / F.gelu default to exact erf.
    @pl.when(r == 0)
    def _messages():
        m = (jnp.dot(x_sc[...].astype(jnp.bfloat16), w1_ref[0],
                     preferred_element_type=jnp.float32) + b1_ref[0])
        m_sc[...] = jax.nn.gelu(m).astype(m_sc.dtype)

    # k-NN aggregation (mean over k neighbors) + residual update for row-tile r.
    row0 = pl.multiple_of(r * tile_rows, tile_rows)
    agg = jnp.dot(adj_ref[...], m_sc[...],
                  preferred_element_type=jnp.float32) * inv_k     # f32 mean
    upd = (jnp.dot(agg.astype(jnp.bfloat16), w2_ref[0],
                   preferred_element_type=jnp.float32) + b2_ref[0])
    x_new = x_sc[pl.ds(row0, tile_rows), :] + jax.nn.gelu(upd)
    x_sc[pl.ds(row0, tile_rows), :] = x_new

    # Projection on the last layer, same row tile (output block stays resident
    # in VMEM and is written to HBM once when the grid finishes).
    @pl.when(l == n_layers - 1)
    def _project():
        out = (jnp.dot(x_new.astype(jnp.bfloat16), proj_w_ref[...],
                       preferred_element_type=jnp.float32) + proj_b_ref[...])
        o_ref[pl.ds(row0, tile_rows), :] = out.astype(o_ref.dtype)


def _vmem_estimate(n_pad, cp, hp, op, tile_rows):
    """Rough upper bound (bytes) on the kernel's VMEM working set."""
    b = 2 * n_pad * cp * 2                      # x input (double-buffered)
    b += 2 * tile_rows * n_pad * 2              # adjacency slab (2 buffers)
    b += 2 * (cp * hp + hp * op) * 2            # lifting / projection weights
    b += 4 * hp * hp * 2                        # w1, w2 layer slabs (2 buffers each)
    b += 8 * hp * 4                             # biases
    b += 2 * n_pad * op * 2                     # output block
    b += n_pad * hp * (4 + 2)                   # x_sc (f32) + m_sc (bf16) scratch
    return b


def gnn_forward(params, inp, adj01, n_neighbor):
    """inp: (1, N, in_dim) -> (1, N, out_dim).  Only batch_size == 1."""
    assert inp.shape[0] == 1, "reference module supports batch_size == 1 only"
    x = inp[0]
    n, in_dim = x.shape
    out_dim = params["out_dim"]
    n_layers = params["w1"].shape[0]

    cp = params["lift_w"].shape[0]              # padded in-channel width
    hp = params["lift_w"].shape[1]              # padded hidden width
    op = params["proj_w"].shape[1]              # padded out width

    # Row padding / adjacency tiling policy (per-generation safe: bounded VMEM).
    n_pad = _round_up(n, _SUBLANES_BF16)
    if 2 * n_pad * n_pad <= _ADJ_RESIDENT_BUDGET:
        tile_rows = n_pad                       # whole adjacency resident, one DMA
    else:
        n_pad = _round_up(n, _ADJ_TILE_ROWS)
        tile_rows = _ADJ_TILE_ROWS              # 512-row slabs, double-buffered
    n_row_tiles = n_pad // tile_rows

    x_p = jnp.zeros((n_pad, cp), jnp.bfloat16).at[:n, :in_dim].set(
        x.astype(jnp.bfloat16))
    adj_p = jnp.zeros((n_pad, n_pad), jnp.bfloat16).at[:n, :n].set(
        adj01.astype(jnp.bfloat16))

    vmem_bytes = _vmem_estimate(n_pad, cp, hp, op, tile_rows)
    try:
        vmem_cap = int(pltpu.get_tpu_info().vmem_capacity_bytes)
    except Exception:
        vmem_cap = 64 * 2 ** 20                 # conservative (v7x per-TC VMEM)
    vmem_limit = int(min(max(2 * vmem_bytes, 32 * 2 ** 20), vmem_cap))

    kernel = functools.partial(_gnn_kernel, tile_rows=tile_rows,
                               inv_k=1.0 / float(n_neighbor))

    full2d = lambda l, r: (0, 0)
    grid_spec = pltpu.PrefetchScalarGridSpec(
        num_scalar_prefetch=0,
        grid=(n_layers, n_row_tiles),
        in_specs=[
            pl.BlockSpec((n_pad, cp), full2d),                       # x
            pl.BlockSpec((tile_rows, n_pad), lambda l, r: (r, 0)),   # adj slab
            pl.BlockSpec((cp, hp), full2d),                          # lift_w
            pl.BlockSpec((1, hp), full2d),                           # lift_b
            pl.BlockSpec((1, hp, hp), lambda l, r: (l, 0, 0)),       # w1[l]
            pl.BlockSpec((1, 1, hp), lambda l, r: (l, 0, 0)),        # b1[l]
            pl.BlockSpec((1, hp, hp), lambda l, r: (l, 0, 0)),       # w2[l]
            pl.BlockSpec((1, 1, hp), lambda l, r: (l, 0, 0)),        # b2[l]
            pl.BlockSpec((hp, op), full2d),                          # proj_w
            pl.BlockSpec((1, op), full2d),                           # proj_b
        ],
        out_specs=pl.BlockSpec((n_pad, op), full2d),
        scratch_shapes=[pltpu.VMEM((n_pad, hp), jnp.float32),        # x carried
                        pltpu.VMEM((n_pad, hp), jnp.bfloat16)],      # messages
    )

    out = pl.pallas_call(
        kernel,
        out_shape=jax.ShapeDtypeStruct((n_pad, op), jnp.bfloat16),
        grid_spec=grid_spec,
        compiler_params=pltpu.CompilerParams(
            dimension_semantics=("arbitrary", "arbitrary"),
            vmem_limit_bytes=vmem_limit),
    )(x_p, adj_p,
      params["lift_w"], params["lift_b"],
      params["w1"], params["b1"], params["w2"], params["b2"],
      params["proj_w"], params["proj_b"])

    return out[None, :n, :out_dim].astype(jnp.float32)


# ----------------------------------------------------------------------------
# Model glue (plain JAX): params, k-NN adjacency
# ----------------------------------------------------------------------------
def _pad2(w, rows, cols):
    out = jnp.zeros((rows, cols), w.dtype)
    return out.at[:w.shape[0], :w.shape[1]].set(w)


def init_params(key, in_dim, hidden_dim, out_dim, n_layers,
                mm_dtype=jnp.bfloat16):
    """Torch-style uniform init at logical sizes, zero-padded to 128 lanes.

    Matmul weights are pre-cast to bf16 once here; biases stay f32 for the VPU.
    """
    def linear_init(k, ci, co):
        kw, kb = jax.random.split(k)
        bound = 1.0 / jnp.sqrt(ci)
        w = jax.random.uniform(kw, (ci, co), jnp.float32, -bound, bound)
        b = jax.random.uniform(kb, (co,), jnp.float32, -bound, bound)
        return w, b

    cp = _round_up(max(in_dim, 1), _LANES)
    hp = _round_up(max(hidden_dim, 1), _LANES)
    op = _round_up(max(out_dim, 1), _LANES)

    keys = jax.random.split(key, 2 + 2 * n_layers)
    lw, lb = linear_init(keys[0], in_dim, hidden_dim)
    pw, pb = linear_init(keys[1], hidden_dim, out_dim)

    w1s, b1s, w2s, b2s = [], [], [], []
    for i in range(n_layers):
        w1, b1 = linear_init(keys[2 + 2 * i], hidden_dim, hidden_dim)
        w2, b2 = linear_init(keys[3 + 2 * i], hidden_dim, hidden_dim)
        w1s.append(_pad2(w1, hp, hp).astype(mm_dtype))
        w2s.append(_pad2(w2, hp, hp).astype(mm_dtype))
        b1s.append(_pad2(b1[None, :], 1, hp))
        b2s.append(_pad2(b2[None, :], 1, hp))

    return {
        "lift_w": _pad2(lw, cp, hp).astype(mm_dtype),
        "lift_b": _pad2(lb[None, :], 1, hp),
        "proj_w": _pad2(pw, hp, op).astype(mm_dtype),
        "proj_b": _pad2(pb[None, :], 1, op),
        "w1": jnp.stack(w1s), "b1": jnp.stack(b1s),
        "w2": jnp.stack(w2s), "b2": jnp.stack(b2s),
        "out_dim": out_dim,
    }


def knn_adjacency01(grid, k):
    """Dense {0,1} k-NN adjacency via top_k (row-mean applied in-kernel as 1/k)."""
    # TODO(synk): for very large N, compute distances in tiles instead of one
    # N x N f32 matrix (host-side cost only; not kernel time).
    n = grid.shape[0]
    d2 = jnp.sum((grid[:, None, :] - grid[None, :, :]) ** 2, axis=-1)
    _, nbr = jax.lax.top_k(-d2, k)            # (N, k), includes self
    adj = jnp.zeros((n, n), jnp.float32)
    adj = adj.at[jnp.arange(n)[:, None], nbr].set(1.0)
    return adj


# ----------------------------------------------------------------------------
if __name__ == "__main__":
    # Small deterministic shapes consistent with the module's forward:
    # inp (1, n_points, in_dim), initial_mesh / input_grid (n_points, n_dim).
    N_POINTS = 128
    N_DIM = 3
    IN_DIM = 6
    HIDDEN_DIM = 32
    OUT_DIM = 3
    N_LAYERS = 2
    N_NEIGHBOR = 8

    key = jax.random.PRNGKey(0)
    k_mesh, k_inp, k_par = jax.random.split(key, 3)

    initial_mesh = jax.random.uniform(k_mesh, (N_POINTS, N_DIM), jnp.float32)
    inp = jax.random.normal(k_inp, (1, N_POINTS, IN_DIM), jnp.float32)

    adj01 = knn_adjacency01(initial_mesh, N_NEIGHBOR)
    params = init_params(k_par, IN_DIM, HIDDEN_DIM, OUT_DIM, N_LAYERS)

    out = gnn_forward(params, inp, adj01, N_NEIGHBOR)
    out = jax.block_until_ready(out)
    assert out.shape == (1, N_POINTS, OUT_DIM), out.shape
    assert bool(jnp.all(jnp.isfinite(out)))
    # TODO(synk): exact GnnLayer / lifting semantics unavailable in the provided
    # source (GnnLayer undefined, self.lifting is a bool); implemented as a
    # k-NN GNO message-passing layer and a linear lifting layer.
    print("KERNEL_OK")
</pallas_src>

<mosaic_0001>
module attributes {stable_mosaic.version = 11 : i64} {
  func.func @_gnn_kernel(%arg0: i32, %arg1: i32, %arg2: memref<128x128xbf16, #tpu.memory_space<vmem>>, %arg3: memref<128x128xbf16, #tpu.memory_space<vmem>>, %arg4: memref<128x128xbf16, #tpu.memory_space<vmem>>, %arg5: memref<1x128xf32, #tpu.memory_space<vmem>>, %arg6: memref<1x128x128xbf16, #tpu.memory_space<vmem>>, %arg7: memref<1x1x128xf32, #tpu.memory_space<vmem>>, %arg8: memref<1x128x128xbf16, #tpu.memory_space<vmem>>, %arg9: memref<1x1x128xf32, #tpu.memory_space<vmem>>, %arg10: memref<128x128xbf16, #tpu.memory_space<vmem>>, %arg11: memref<1x128xf32, #tpu.memory_space<vmem>>, %arg12: memref<128x128xbf16, #tpu.memory_space<vmem>>, %arg13: memref<128x128xf32, #tpu.memory_space<vmem>>, %arg14: memref<128x128xbf16, #tpu.memory_space<vmem>>) attributes {dimension_semantics = [#tpu.dimension_semantics<arbitrary>, #tpu.dimension_semantics<arbitrary>], iteration_bounds = array<i64: 2, 1>, scalar_prefetch = 0 : i64, scratch_operands = 2 : i64, tpu.core_type = #tpu.core_type<tc>, window_params = [{pipeline_mode = #tpu.pipeline_mode<synchronous>, transform_indices = @transform_0, window_bounds = array<i64: 128, 128>}, {transform_indices = @transform_1, window_bounds = array<i64: 128, 128>}, {pipeline_mode = #tpu.pipeline_mode<synchronous>, transform_indices = @transform_2, window_bounds = array<i64: 128, 128>}, {pipeline_mode = #tpu.pipeline_mode<synchronous>, transform_indices = @transform_3, window_bounds = array<i64: 1, 128>}, {transform_indices = @transform_4, window_bounds = array<i64: 1, 128, 128>}, {transform_indices = @transform_5, window_bounds = array<i64: 1, 1, 128>}, {transform_indices = @transform_6, window_bounds = array<i64: 1, 128, 128>}, {transform_indices = @transform_7, window_bounds = array<i64: 1, 1, 128>}, {pipeline_mode = #tpu.pipeline_mode<synchronous>, transform_indices = @transform_8, window_bounds = array<i64: 128, 128>}, {pipeline_mode = #tpu.pipeline_mode<synchronous>, transform_indices = @transform_9, window_bounds = array<i64: 1, 128>}, {pipeline_mode = #tpu.pipeline_mode<synchronous>, transform_indices = @transform_10, window_bounds = array<i64: 128, 128>}]} {
    %c0_i32 = arith.constant 0 : i32
    %0 = arith.cmpi eq, %arg0, %c0_i32 : i32
    %c0_i32_0 = arith.constant 0 : i32
    %1 = arith.cmpi eq, %arg1, %c0_i32_0 : i32
    %2 = arith.andi %0, %1 : i1
    %3 = arith.extui %2 : i1 to i32
    %c0_i32_1 = arith.constant 0 : i32
    %4 = arith.cmpi ne, %3, %c0_i32_1 : i32
    scf.if %4 {
      %c0_22 = arith.constant 0 : index
      %c0_23 = arith.constant 0 : index
      %44 = vector.load %arg2[%c0_22, %c0_23] : memref<128x128xbf16, #tpu.memory_space<vmem>>, vector<128x128xbf16>
      %c0_24 = arith.constant 0 : index
      %c0_25 = arith.constant 0 : index
      %45 = vector.load %arg4[%c0_24, %c0_25] : memref<128x128xbf16, #tpu.memory_space<vmem>>, vector<128x128xbf16>
      %cst_26 = arith.constant dense<0.000000e+00> : vector<128x128xf32>
      %46 = tpu.matmul %44, %45, %cst_26 {dimension_numbers = #tpu.dot_dimension_numbers<[1], [0], [0], [1], [0, 0, 1, 1], [], []>} : vector<128x128xbf16>, vector<128x128xbf16>, vector<128x128xf32> -> vector<128x128xf32>
      %c0_27 = arith.constant 0 : index
      %c0_28 = arith.constant 0 : index
      %47 = vector.load %arg5[%c0_27, %c0_28] : memref<1x128xf32, #tpu.memory_space<vmem>>, vector<1x128xf32>
      %48 = vector.broadcast %47 : vector<1x128xf32> to vector<128x128xf32>
      %49 = arith.addf %46, %48 : vector<128x128xf32>
      %c0_29 = arith.constant 0 : index
      %c0_30 = arith.constant 0 : index
      %50 = vector.load %arg13[%c0_29, %c0_30] : memref<128x128xf32, #tpu.memory_space<vmem>>, vector<128x128xf32>
      tpu.vector_store %arg13[%c0_29, %c0_30], %49 {strides = array<i32>} : memref<128x128xf32, #tpu.memory_space<vmem>>, vector<128x128xf32>,
    } else {
    }
    %c0_i32_2 = arith.constant 0 : i32
    %5 = arith.cmpi eq, %arg1, %c0_i32_2 : i32
    %6 = arith.extui %5 : i1 to i32
    %c0_i32_3 = arith.constant 0 : i32
    %7 = arith.cmpi ne, %6, %c0_i32_3 : i32
    scf.if %7 {
      %c0_22 = arith.constant 0 : index
      %c0_23 = arith.constant 0 : index
      %44 = vector.load %arg13[%c0_22, %c0_23] : memref<128x128xf32, #tpu.memory_space<vmem>>, vector<128x128xf32>
      %45 = arith.truncf %44 : vector<128x128xf32> to vector<128x128xbf16>
      %c0_24 = arith.constant 0 : index
      %c0_25 = arith.constant 0 : index
      %c0_26 = arith.constant 0 : index
      %46 = vector.load %arg6[%c0_24, %c0_25, %c0_26] : memref<1x128x128xbf16, #tpu.memory_space<vmem>>, vector<1x128x128xbf16>
      %47 = vector.shape_cast %46 : vector<1x128x128xbf16> to vector<128x128xbf16>
      %cst_27 = arith.constant dense<0.000000e+00> : vector<128x128xf32>
      %48 = tpu.matmul %45, %47, %cst_27 {dimension_numbers = #tpu.dot_dimension_numbers<[1], [0], [0], [1], [0, 0, 1, 1], [], []>} : vector<128x128xbf16>, vector<128x128xbf16>, vector<128x128xf32> -> vector<128x128xf32>
      %c0_28 = arith.constant 0 : index
      %c0_29 = arith.constant 0 : index
      %c0_30 = arith.constant 0 : index
      %49 = vector.load %arg7[%c0_28, %c0_29, %c0_30] : memref<1x1x128xf32, #tpu.memory_space<vmem>>, vector<1x1x128xf32>
      %50 = vector.shape_cast %49 : vector<1x1x128xf32> to vector<1x128xf32>
      %51 = vector.broadcast %50 : vector<1x128xf32> to vector<128x128xf32>
      %52 = arith.addf %48, %51 : vector<128x128xf32>
      %53 = arith.mulf %52, %52 : vector<128x128xf32>
      %54 = arith.mulf %52, %53 : vector<128x128xf32>
      %cst_31 = arith.constant 4.471500e-02 : f32
      %55 = vector.broadcast %cst_31 : f32 to vector<128x128xf32>
      %56 = arith.mulf %55, %54 : vector<128x128xf32>
      %57 = arith.addf %52, %56 : vector<128x128xf32>
      %cst_32 = arith.constant 0.797884583 : f32
      %58 = vector.broadcast %cst_32 : f32 to vector<128x128xf32>
      %59 = arith.mulf %58, %57 : vector<128x128xf32>
      %60 = math.tanh %59 : vector<128x128xf32>
      %cst_33 = arith.constant 1.000000e+00 : f32
      %61 = vector.broadcast %cst_33 : f32 to vector<128x128xf32>
      %62 = arith.addf %61, %60 : vector<128x128xf32>
      %cst_34 = arith.constant 5.000000e-01 : f32
      %63 = vector.broadcast %cst_34 : f32 to vector<128x128xf32>
      %64 = arith.mulf %63, %62 : vector<128x128xf32>
      %65 = arith.mulf %52, %64 : vector<128x128xf32>
      %66 = arith.truncf %65 : vector<128x128xf32> to vector<128x128xbf16>
      %c0_35 = arith.constant 0 : index
      %c0_36 = arith.constant 0 : index
      %67 = vector.load %arg14[%c0_35, %c0_36] : memref<128x128xbf16, #tpu.memory_space<vmem>>, vector<128x128xbf16>
      tpu.vector_store %arg14[%c0_35, %c0_36], %66 {strides = array<i32>} : memref<128x128xbf16, #tpu.memory_space<vmem>>, vector<128x128xbf16>,
    } else {
    }
    %c128_i32 = arith.constant 128 : i32
    %8 = arith.muli %arg1, %c128_i32 : i32
    %9 = tpu.assume_multiple %8, 128 : i32
    %c0 = arith.constant 0 : index
    %c0_4 = arith.constant 0 : index
    %10 = vector.load %arg3[%c0, %c0_4] : memref<128x128xbf16, #tpu.memory_space<vmem>>, vector<128x128xbf16>
    %c0_5 = arith.constant 0 : index
    %c0_6 = arith.constant 0 : index
    %11 = vector.load %arg14[%c0_5, %c0_6] : memref<128x128xbf16, #tpu.memory_space<vmem>>, vector<128x128xbf16>
    %cst = arith.constant dense<0.000000e+00> : vector<128x128xf32>
    %12 = tpu.matmul %10, %11, %cst {dimension_numbers = #tpu.dot_dimension_numbers<[1], [0], [0], [1], [0, 0, 1, 1], [], []>} : vector<128x128xbf16>, vector<128x128xbf16>, vector<128x128xf32> -> vector<128x128xf32>
    %cst_7 = arith.constant 1.250000e-01 : f32
    %13 = vector.broadcast %cst_7 : f32 to vector<128x128xf32>
    %14 = arith.mulf %12, %13 : vector<128x128xf32>
    %15 = arith.truncf %14 : vector<128x128xf32> to vector<128x128xbf16>
    %c0_8 = arith.constant 0 : index
    %c0_9 = arith.constant 0 : index
    %c0_10 = arith.constant 0 : index
    %16 = vector.load %arg8[%c0_8, %c0_9, %c0_10] : memref<1x128x128xbf16, #tpu.memory_space<vmem>>, vector<1x128x128xbf16>
    %17 = vector.shape_cast %16 : vector<1x128x128xbf16> to vector<128x128xbf16>
    %cst_11 = arith.constant dense<0.000000e+00> : vector<128x128xf32>
    %18 = tpu.matmul %15, %17, %cst_11 {dimension_numbers = #tpu.dot_dimension_numbers<[1], [0], [0], [1], [0, 0, 1, 1], [], []>} : vector<128x128xbf16>, vector<128x128xbf16>, vector<128x128xf32> -> vector<128x128xf32>
    %c0_12 = arith.constant 0 : index
    %c0_13 = arith.constant 0 : index
    %c0_14 = arith.constant 0 : index
    %19 = vector.load %arg9[%c0_12, %c0_13, %c0_14] : memref<1x1x128xf32, #tpu.memory_space<vmem>>, vector<1x1x128xf32>
    %20 = vector.shape_cast %19 : vector<1x1x128xf32> to vector<1x128xf32>
    %21 = vector.broadcast %20 : vector<1x128xf32> to vector<128x128xf32>
    %22 = arith.addf %18, %21 : vector<128x128xf32>
    %23 = arith.index_cast %9 : i32 to index
    %c0_15 = arith.constant 0 : index
    %24 = vector.load %arg13[%23, %c0_15] : memref<128x128xf32, #tpu.memory_space<vmem>>, vector<128x128xf32>
    %25 = arith.mulf %22, %22 : vector<128x128xf32>
    %26 = arith.mulf %22, %25 : vector<128x128xf32>
    %cst_16 = arith.constant 4.471500e-02 : f32
    %27 = vector.broadcast %cst_16 : f32 to vector<128x128xf32>
    %28 = arith.mulf %27, %26 : vector<128x128xf32>
    %29 = arith.addf %22, %28 : vector<128x128xf32>
    %cst_17 = arith.constant 0.797884583 : f32
    %30 = vector.broadcast %cst_17 : f32 to vector<128x128xf32>
    %31 = arith.mulf %30, %29 : vector<128x128xf32>
    %32 = math.tanh %31 : vector<128x128xf32>
    %cst_18 = arith.constant 1.000000e+00 : f32
    %33 = vector.broadcast %cst_18 : f32 to vector<128x128xf32>
    %34 = arith.addf %33, %32 : vector<128x128xf32>
    %cst_19 = arith.constant 5.000000e-01 : f32
    %35 = vector.broadcast %cst_19 : f32 to vector<128x128xf32>
    %36 = arith.mulf %35, %34 : vector<128x128xf32>
    %37 = arith.mulf %22, %36 : vector<128x128xf32>
    %38 = arith.addf %24, %37 : vector<128x128xf32>
    %39 = arith.index_cast %9 : i32 to index
    %c0_20 = arith.constant 0 : index
    %40 = vector.load %arg13[%39, %c0_20] : memref<128x128xf32, #tpu.memory_space<vmem>>, vector<128x128xf32>
    tpu.vector_store %arg13[%39, %c0_20], %38 {strides = array<i32>} : memref<128x128xf32, #tpu.memory_space<vmem>>, vector<128x128xf32>,
    %c1_i32 = arith.constant 1 : i32
    %41 = arith.cmpi eq, %arg0, %c1_i32 : i32
    %42 = arith.extui %41 : i1 to i32
    %c0_i32_21 = arith.constant 0 : i32
    %43 = arith.cmpi ne, %42, %c0_i32_21 : i32
    scf.if %43 {
      %44 = arith.truncf %38 : vector<128x128xf32> to vector<128x128xbf16>
      %c0_22 = arith.constant 0 : index
      %c0_23 = arith.constant 0 : index
      %45 = vector.load %arg10[%c0_22, %c0_23] : memref<128x128xbf16, #tpu.memory_space<vmem>>, vector<128x128xbf16>
      %cst_24 = arith.constant dense<0.000000e+00> : vector<128x128xf32>
      %46 = tpu.matmul %44, %45, %cst_24 {dimension_numbers = #tpu.dot_dimension_numbers<[1], [0], [0], [1], [0, 0, 1, 1], [], []>} : vector<128x128xbf16>, vector<128x128xbf16>, vector<128x128xf32> -> vector<128x128xf32>
      %c0_25 = arith.constant 0 : index
      %c0_26 = arith.constant 0 : index
      %47 = vector.load %arg11[%c0_25, %c0_26] : memref<1x128xf32, #tpu.memory_space<vmem>>, vector<1x128xf32>
      %48 = vector.broadcast %47 : vector<1x128xf32> to vector<128x128xf32>
      %49 = arith.addf %46, %48 : vector<128x128xf32>
      %50 = arith.truncf %49 : vector<128x128xf32> to vector<128x128xbf16>
      %51 = arith.index_cast %9 : i32 to index
      %c0_27 = arith.constant 0 : index
      %52 = vector.load %arg12[%51, %c0_27] : memref<128x128xbf16, #tpu.memory_space<vmem>>, vector<128x128xbf16>
      tpu.vector_store %arg12[%51, %c0_27], %50 {strides = array<i32>} : memref<128x128xbf16, #tpu.memory_space<vmem>>, vector<128x128xbf16>,
    } else {
    }
    return
  }
  func.func @transform_0(%arg0: i32, %arg1: i32) -> (i32, i32) {
    %c0_i32 = arith.constant 0 : i32
    %c0_i32_0 = arith.constant 0 : i32
    %c0_i32_1 = arith.constant 0 : i32
    return %c0_i32, %c0_i32_0 : i32, i32
  }
  func.func @transform_1(%arg0: i32, %arg1: i32) -> (i32, i32) {
    %c0_i32 = arith.constant 0 : i32
    %c0_i32_0 = arith.constant 0 : i32
    return %arg1, %c0_i32 : i32, i32
  }
  func.func @transform_2(%arg0: i32, %arg1: i32) -> (i32, i32) {
    %c0_i32 = arith.constant 0 : i32
    %c0_i32_0 = arith.constant 0 : i32
    %c0_i32_1 = arith.constant 0 : i32
    return %c0_i32, %c0_i32_0 : i32, i32
  }
  func.func @transform_3(%arg0: i32, %arg1: i32) -> (i32, i32) {
    %c0_i32 = arith.constant 0 : i32
    %c0_i32_0 = arith.constant 0 : i32
    %c0_i32_1 = arith.constant 0 : i32
    return %c0_i32, %c0_i32_0 : i32, i32
  }
  func.func @transform_4(%arg0: i32, %arg1: i32) -> (i32, i32, i32) {
    %c0_i32 = arith.constant 0 : i32
    %c0_i32_0 = arith.constant 0 : i32
    %c0_i32_1 = arith.constant 0 : i32
    return %arg0, %c0_i32, %c0_i32_0 : i32, i32, i32
  }
  func.func @transform_5(%arg0: i32, %arg1: i32) -> (i32, i32, i32) {
    %c0_i32 = arith.constant 0 : i32
    %c0_i32_0 = arith.constant 0 : i32
    %c0_i32_1 = arith.constant 0 : i32
    return %arg0, %c0_i32, %c0_i32_0 : i32, i32, i32
  }
  func.func @transform_6(%arg0: i32, %arg1: i32) -> (i32, i32, i32) {
    %c0_i32 = arith.constant 0 : i32
    %c0_i32_0 = arith.constant 0 : i32
    %c0_i32_1 = arith.constant 0 : i32
    return %arg0, %c0_i32, %c0_i32_0 : i32, i32, i32
  }
  func.func @transform_7(%arg0: i32, %arg1: i32) -> (i32, i32, i32) {
    %c0_i32 = arith.constant 0 : i32
    %c0_i32_0 = arith.constant 0 : i32
    %c0_i32_1 = arith.constant 0 : i32
    return %arg0, %c0_i32, %c0_i32_0 : i32, i32, i32
  }
  func.func @transform_8(%arg0: i32, %arg1: i32) -> (i32, i32) {
    %c0_i32 = arith.constant 0 : i32
    %c0_i32_0 = arith.constant 0 : i32
    %c0_i32_1 = arith.constant 0 : i32
    return %c0_i32, %c0_i32_0 : i32, i32
  }
  func.func @transform_9(%arg0: i32, %arg1: i32) -> (i32, i32) {
    %c0_i32 = arith.constant 0 : i32
    %c0_i32_0 = arith.constant 0 : i32
    %c0_i32_1 = arith.constant 0 : i32
    return %c0_i32, %c0_i32_0 : i32, i32
  }
  func.func @transform_10(%arg0: i32, %arg1: i32) -> (i32, i32) {
    %c0_i32 = arith.constant 0 : i32
    %c0_i32_0 = arith.constant 0 : i32
    %c0_i32_1 = arith.constant 0 : i32
    return %c0_i32, %c0_i32_0 : i32, i32
  }
}

</mosaic_0001>

<llo_original>
// kernel: tpu_custom_call.1
$region0: #{tpu_custom_call.1}
  #allocation0 [shape = 'u32[]', space=smem, size = 0x4, offset = 0x4, fixed_abs, tag = 'smem constant byte address 0x4 - core index']
  #allocation1 [shape = 'u32[144,128]{1,0:T(1,128)}', space=vmem, size = 0x12000, scoped, tag = 'internal scratch']
  #allocation2 [shape = 'f32[128,128]{1,0:T(8,128)}', space=vmem, size = 0x10000, scoped, tag = 'scratch operand']
  #allocation3 [shape = 'bf16[128,128]{1,0:T(16,128)(2,1)}', space=vmem, size = 0x8000, scoped, tag = 'scratch operand']
  %s0 = inlined_call_operand.hbm [shape: bf16[128,128], index: 0, kind: input, shape index: {}]
  %s1 = inlined_call_operand.hbm [shape: bf16[128,128], index: 1, kind: input, shape index: {}]
  %s2 = inlined_call_operand.hbm [shape: bf16[128,128], index: 2, kind: input, shape index: {}]
  %s3 = inlined_call_operand.vmem [shape: f32[1,128], index: 3, kind: input, shape index: {}]
  %s4 = inlined_call_operand.hbm [shape: bf16[2,128,128], index: 4, kind: input, shape index: {}]
  %s5 = inlined_call_operand.vmem [shape: f32[2,1,128], index: 5, kind: input, shape index: {}]
  %s6 = inlined_call_operand.hbm [shape: bf16[2,128,128], index: 6, kind: input, shape index: {}]
  %s7 = inlined_call_operand.vmem [shape: f32[2,1,128], index: 7, kind: input, shape index: {}]
  %s8 = inlined_call_operand.hbm [shape: bf16[128,128], index: 8, kind: input, shape index: {}]
  %s9 = inlined_call_operand.vmem [shape: f32[1,128], index: 9, kind: input, shape index: {}]
  %s10 = inlined_call_operand.hbm [shape: bf16[128,128], index: 10, kind: output, shape index: {}]
  %s11 = sld [smem:[#allocation0]]
  $region109: #{tpu_custom_call.1} parent=0
    _
  %s13 = ssub.s32 1, %s11
  %s14 = scalar_select 0, %s13, %s11
  $region1: #{tpu_custom_call.1} parent=0
    #allocation4 [shape = 'u8[32768]{0}', space=vmem, size = 0x8000, scoped, tag = 'input window, operand 0, single buffered']
    #allocation5 [shape = 's32[2]{0}', space=sflag, size = 0x8, scoped, tag = 'scoped memory for tpu_custom_call.1']
    #allocation6 [shape = 's32[2]{0}', space=sflag, size = 0x8, scoped, tag = 'scoped memory for tpu_custom_call.1']
    #allocation7 [shape = 'u8[32768]{0}', space=vmem, size = 0x8000, scoped, tag = 'input window, operand 1, single buffered']
    #allocation8 [shape = 's32[1]{0}', space=sflag, size = 0x4, scoped, tag = 'scoped memory for tpu_custom_call.1']
    #allocation9 [shape = 'u8[32768]{0}', space=vmem, size = 0x8000, scoped, tag = 'input window, operand 2, single buffered']
    #allocation10 [shape = 'u8[65536]{0}', space=vmem, size = 0x10000, scoped, tag = 'input window, operand 4']
    #allocation11 [shape = 's32[2]{0}', space=sflag, size = 0x8, scoped, tag = 'scoped memory for tpu_custom_call.1']
    #allocation12 [shape = 'u8[65536]{0}', space=vmem, size = 0x10000, scoped, tag = 'input window, operand 6']
    #allocation13 [shape = 'u8[32768]{0}', space=vmem, size = 0x8000, scoped, tag = 'input window, operand 8, single buffered']
    #allocation14 [shape = 's32[1]{0}', space=sflag, size = 0x4, scoped, tag = 'scoped memory for tpu_custom_call.1']
    #allocation15 [shape = 'u8[32768]{0}', space=vmem, size = 0x8000, scoped, tag = 'output window, operand 0, single buffered']
    %15 = vsyncpa [#allocation5], 0
    %16 = vsyncpa [#allocation8], 0
    %17 = vsyncpa [#allocation11], 0
    %s18 = scalar_lea.sflag [#allocation11], 1
    %19 = vsyncpa %s18, 0
    %20 = vsyncpa [#allocation14], 0
    %21 = vsyncpa [#allocation6], 0
    loop: start=0, step=1, limit=4
    $region2: #{tpu_custom_call.1} parent=1 // loop_pre_header
      _
    $region3: #{tpu_custom_call.1} parent=1 // loop_header
      %s23 = sphi 0, %s27
      %p24 = scmp.ge.s32.totalorder %s23, 4
      %s30 = sphi 0, %s42
      %s31 = sphi 0, %s38
      %s32 = sphi 0, %s30
      %s33 = sphi 0, %s31
      %s34 = sphi 0, %s32
      %s35 = sphi 0, %s33
      %s43 = sphi 0, %s43
      %s45 = sphi 0, %s43
      %s46 = sphi 0, %s45
      %s60 = sphi 0, %s46
      %s66 = sphi 0, %s68
      %s69 = sphi 0, %s66
      %s70 = sphi 0, %s69
      %s86 = sphi 0, %s70
      %s90 = sphi 0, %s90
      %s92 = sphi 0, %s90
      %s93 = sphi 0, %s92
      %s107 = sphi 0, %s93
      %s111 = sphi 0, %s111
      %s113 = sphi 0, %s111
      %s114 = sphi 0, %s113
      %s128 = sphi 0, %s114
      %s134 = sphi 0, %s136
      %s137 = sphi 0, %s134
      %s138 = sphi 0, %s137
      %s154 = sphi 0, %s138
      %s160 = sphi 0, %s162
      %s163 = sphi 0, %s160
      %s164 = sphi 0, %s163
      %s180 = sphi 0, %s164
      %s186 = sphi 0, %s188
      %s189 = sphi 0, %s186
      %s190 = sphi 0, %s189
      %s206 = sphi 0, %s190
      %s212 = sphi 0, %s214
      %s215 = sphi 0, %s212
      %s216 = sphi 0, %s215
      %s232 = sphi 0, %s216
      %s236 = sphi 0, %s236
      %s238 = sphi 0, %s236
      %s239 = sphi 0, %s238
      %s253 = sphi 0, %s239
      %s257 = sphi 0, %s257
      %s259 = sphi 0, %s257
      %s260 = sphi 0, %s259
      %s274 = sphi 0, %s260
      %s278 = sphi 0, %s278
      %s280 = sphi 0, %s278
      %s281 = sphi 0, %s280
      %s295 = sphi 0, %s281
    $region4: #{tpu_custom_call.1} parent=1 // loop_header_branch
      %26 = sbr.rel (%p24) target = $region8
    $region5: #{tpu_custom_call.1} parent=1 // loop_body
      %s28 = ssub.s32 %s23, 1
      %s29 = ssub.s32 %s23, 2
      %s36 = sadd.s32 1, %s31
      %p37 = scmp.ge.s32.totalorder %s36, 1
      %s38 = scalar_select %p37, 0, %s36
      %s39 = sadd.s32 1, %s30
      %s40 = scalar_select %p37, %s39, %s30
      %p41 = scmp.ge.s32.totalorder %s40, 2
      %s42 = scalar_select %p41, 0, %s40
      %s44 = sadd.s32 %s43, 1
      %p47 = scmp.eq.s32.totalorder %s23, 1
      %p48 = scmp.ne.s32.totalorder %s43, %s45
      %p49 = scmp.eq.s32.totalorder %s23, 0
      %p50 = por %p48, %p49
      %p51 = scmp.ne.s32.totalorder %s43, %s45
      %p52 = scmp.eq.s32.totalorder %s28, 1
      %p53 = por %p51, %p52
      %p54 = scmp.ne.s32.totalorder %s45, %s46
      %p55 = scmp.eq.s32.totalorder %s28, 0
      %p56 = por %p54, %p55
      %p57 = scmp.ne.s32.totalorder %s45, %s46
      %p58 = scmp.eq.s32.totalorder %s29, 1
      %p59 = por %p57, %p58
      %p61 = scmp.ne.s32.totalorder %s46, %s60
      %p62 = scmp.eq.s32.totalorder %s29, 0
      %p63 = por %p61, %p62
      %s64 = ssub.s32 %s31, %s38
      %p65 = scmp.eq.s32.totalorder %s64, 0
      %s67 = sadd.s32 %s66, 1
      %s68 = scalar_select %p65, %s66, %s67
      %p71 = pneg %p65
      %p72 = scmp.eq.s32.totalorder %s23, 1
      %p73 = por %p71, %p72
      %p74 = scmp.ne.s32.totalorder %s66, %s69
      %p75 = scmp.eq.s32.totalorder %s23, 0
      %p76 = por %p74, %p75
      %p77 = scmp.ne.s32.totalorder %s66, %s69
      %p78 = scmp.eq.s32.totalorder %s28, 1
      %p79 = por %p77, %p78
      %p80 = scmp.ne.s32.totalorder %s69, %s70
      %p81 = scmp.eq.s32.totalorder %s28, 0
      %p82 = por %p80, %p81
      %p83 = scmp.ne.s32.totalorder %s69, %s70
      %p84 = scmp.eq.s32.totalorder %s29, 1
      %p85 = por %p83, %p84
      %p87 = scmp.ne.s32.totalorder %s70, %s86
      %p88 = scmp.eq.s32.totalorder %s29, 0
      %p89 = por %p87, %p88
      %s91 = sadd.s32 %s90, 1
      %p94 = scmp.eq.s32.totalorder %s23, 1
      %p95 = scmp.ne.s32.totalorder %s90, %s92
      %p96 = scmp.eq.s32.totalorder %s23, 0
      %p97 = por %p95, %p96
      %p98 = scmp.ne.s32.totalorder %s90, %s92
      %p99 = scmp.eq.s32.totalorder %s28, 1
      %p100 = por %p98, %p99
      %p101 = scmp.ne.s32.totalorder %s92, %s93
      %p102 = scmp.eq.s32.totalorder %s28, 0
      %p103 = por %p101, %p102
      %p104 = scmp.ne.s32.totalorder %s92, %s93
      %p105 = scmp.eq.s32.totalorder %s29, 1
      %p106 = por %p104, %p105
      %p108 = scmp.ne.s32.totalorder %s93, %s107
      %p109 = scmp.eq.s32.totalorder %s29, 0
      %p110 = por %p108, %p109
      %s112 = sadd.s32 %s111, 1
      %p115 = scmp.eq.s32.totalorder %s23, 1
      %p116 = scmp.ne.s32.totalorder %s111, %s113
      %p117 = scmp.eq.s32.totalorder %s23, 0
      %p118 = por %p116, %p117
      %p119 = scmp.ne.s32.totalorder %s111, %s113
      %p120 = scmp.eq.s32.totalorder %s28, 1
      %p121 = por %p119, %p120
      %p122 = scmp.ne.s32.totalorder %s113, %s114
      %p123 = scmp.eq.s32.totalorder %s28, 0
      %p124 = por %p122, %p123
      %p125 = scmp.ne.s32.totalorder %s113, %s114
      %p126 = scmp.eq.s32.totalorder %s29, 1
      %p127 = por %p125, %p126
      %p129 = scmp.ne.s32.totalorder %s114, %s128
      %p130 = scmp.eq.s32.totalorder %s29, 0
      %p131 = por %p129, %p130
      %s132 = ssub.s32 %s30, %s42
      %p133 = scmp.eq.s32.totalorder %s132, 0
      %s135 = sadd.s32 %s134, 1
      %s136 = scalar_select %p133, %s134, %s135
      %p139 = pneg %p133
      %p140 = scmp.eq.s32.totalorder %s23, 1
      %p141 = por %p139, %p140
      %p142 = scmp.ne.s32.totalorder %s134, %s137
      %p143 = scmp.eq.s32.totalorder %s23, 0
      %p144 = por %p142, %p143
      %p145 = scmp.ne.s32.totalorder %s134, %s137
      %p146 = scmp.eq.s32.totalorder %s28, 1
      %p147 = por %p145, %p146
      %p148 = scmp.ne.s32.totalorder %s137, %s138
      %p149 = scmp.eq.s32.totalorder %s28, 0
      %p150 = por %p148, %p149
      %p151 = scmp.ne.s32.totalorder %s137, %s138
      %p152 = scmp.eq.s32.totalorder %s29, 1
      %p153 = por %p151, %p152
      %p155 = scmp.ne.s32.totalorder %s138, %s154
      %p156 = scmp.eq.s32.totalorder %s29, 0
      %p157 = por %p155, %p156
      %s158 = ssub.s32 %s30, %s42
      %p159 = scmp.eq.s32.totalorder %s158, 0
      %s161 = sadd.s32 %s160, 1
      %s162 = scalar_select %p159, %s160, %s161
      %p165 = pneg %p159
      %p166 = scmp.eq.s32.totalorder %s23, 1
      %p167 = por %p165, %p166
      %p168 = scmp.ne.s32.totalorder %s160, %s163
      %p169 = scmp.eq.s32.totalorder %s23, 0
      %p170 = por %p168, %p169
      %p171 = scmp.ne.s32.totalorder %s160, %s163
      %p172 = scmp.eq.s32.totalorder %s28, 1
      %p173 = por %p171, %p172
      %p174 = scmp.ne.s32.totalorder %s163, %s164
      %p175 = scmp.eq.s32.totalorder %s28, 0
      %p176 = por %p174, %p175
      %p177 = scmp.ne.s32.totalorder %s163, %s164
      %p178 = scmp.eq.s32.totalorder %s29, 1
      %p179 = por %p177, %p178
      %p181 = scmp.ne.s32.totalorder %s164, %s180
      %p182 = scmp.eq.s32.totalorder %s29, 0
      %p183 = por %p181, %p182
      %s184 = ssub.s32 %s30, %s42
      %p185 = scmp.eq.s32.totalorder %s184, 0
      %s187 = sadd.s32 %s186, 1
      %s188 = scalar_select %p185, %s186, %s187
      %p191 = pneg %p185
      %p192 = scmp.eq.s32.totalorder %s23, 1
      %p193 = por %p191, %p192
      %p194 = scmp.ne.s32.totalorder %s186, %s189
      %p195 = scmp.eq.s32.totalorder %s23, 0
      %p196 = por %p194, %p195
      %p197 = scmp.ne.s32.totalorder %s186, %s189
      %p198 = scmp.eq.s32.totalorder %s28, 1
      %p199 = por %p197, %p198
      %p200 = scmp.ne.s32.totalorder %s189, %s190
      %p201 = scmp.eq.s32.totalorder %s28, 0
      %p202 = por %p200, %p201
      %p203 = scmp.ne.s32.totalorder %s189, %s190
      %p204 = scmp.eq.s32.totalorder %s29, 1
      %p205 = por %p203, %p204
      %p207 = scmp.ne.s32.totalorder %s190, %s206
      %p208 = scmp.eq.s32.totalorder %s29, 0
      %p209 = por %p207, %p208
      %s210 = ssub.s32 %s30, %s42
      %p211 = scmp.eq.s32.totalorder %s210, 0
      %s213 = sadd.s32 %s212, 1
      %s214 = scalar_select %p211, %s212, %s213
      %p217 = pneg %p211
      %p218 = scmp.eq.s32.totalorder %s23, 1
      %p219 = por %p217, %p218
      %p220 = scmp.ne.s32.totalorder %s212, %s215
      %p221 = scmp.eq.s32.totalorder %s23, 0
      %p222 = por %p220, %p221
      %p223 = scmp.ne.s32.totalorder %s212, %s215
      %p224 = scmp.eq.s32.totalorder %s28, 1
      %p225 = por %p223, %p224
      %p226 = scmp.ne.s32.totalorder %s215, %s216
      %p227 = scmp.eq.s32.totalorder %s28, 0
      %p228 = por %p226, %p227
      %p229 = scmp.ne.s32.totalorder %s215, %s216
      %p230 = scmp.eq.s32.totalorder %s29, 1
      %p231 = por %p229, %p230
      %p233 = scmp.ne.s32.totalorder %s216, %s232
      %p234 = scmp.eq.s32.totalorder %s29, 0
      %p235 = por %p233, %p234
      %s237 = sadd.s32 %s236, 1
      %p240 = scmp.eq.s32.totalorder %s23, 1
      %p241 = scmp.ne.s32.totalorder %s236, %s238
      %p242 = scmp.eq.s32.totalorder %s23, 0
      %p243 = por %p241, %p242
      %p244 = scmp.ne.s32.totalorder %s236, %s238
      %p245 = scmp.eq.s32.totalorder %s28, 1
      %p246 = por %p244, %p245
      %p247 = scmp.ne.s32.totalorder %s238, %s239
      %p248 = scmp.eq.s32.totalorder %s28, 0
      %p249 = por %p247, %p248
      %p250 = scmp.ne.s32.totalorder %s238, %s239
      %p251 = scmp.eq.s32.totalorder %s29, 1
      %p252 = por %p250, %p251
      %p254 = scmp.ne.s32.totalorder %s239, %s253
      %p255 = scmp.eq.s32.totalorder %s29, 0
      %p256 = por %p254, %p255
      %s258 = sadd.s32 %s257, 1
      %p261 = scmp.eq.s32.totalorder %s23, 1
      %p262 = scmp.ne.s32.totalorder %s257, %s259
      %p263 = scmp.eq.s32.totalorder %s23, 0
      %p264 = por %p262, %p263
      %p265 = scmp.ne.s32.totalorder %s257, %s259
      %p266 = scmp.eq.s32.totalorder %s28, 1
      %p267 = por %p265, %p266
      %p268 = scmp.ne.s32.totalorder %s259, %s260
      %p269 = scmp.eq.s32.totalorder %s28, 0
      %p270 = por %p268, %p269
      %p271 = scmp.ne.s32.totalorder %s259, %s260
      %p272 = scmp.eq.s32.totalorder %s29, 1
      %p273 = por %p271, %p272
      %p275 = scmp.ne.s32.totalorder %s260, %s274
      %p276 = scmp.eq.s32.totalorder %s29, 0
      %p277 = por %p275, %p276
      %s279 = sadd.s32 %s278, 1
      %p282 = scmp.eq.s32.totalorder %s23, 1
      %p283 = scmp.ne.s32.totalorder %s278, %s280
      %p284 = scmp.eq.s32.totalorder %s23, 0
      %p285 = por %p283, %p284
      %p286 = scmp.ne.s32.totalorder %s278, %s280
      %p287 = scmp.eq.s32.totalorder %s28, 1
      %p288 = por %p286, %p287
      %p289 = scmp.ne.s32.totalorder %s280, %s281
      %p290 = scmp.eq.s32.totalorder %s28, 0
      %p291 = por %p289, %p290
      %p292 = scmp.ne.s32.totalorder %s280, %s281
      %p293 = scmp.eq.s32.totalorder %s29, 1
      %p294 = por %p292, %p293
      %p296 = scmp.ne.s32.totalorder %s281, %s295
      %p297 = scmp.eq.s32.totalorder %s29, 0
      %p298 = por %p296, %p297
      %p299 = scmp.le.s32.totalorder 1, %s23
      %p300 = scmp.lt.s32.totalorder %s23, 3
      %p301 = pnand %p299, %p300
      %p302 = pneg %p301
      // Predicated region
      $region9: #{tpu_custom_call.1} parent=5 // pred_check
        _
      $region10: #{tpu_custom_call.1} parent=5 // pred_check_branch
        %304 = sbr.rel (%p301) target = $region12
      $region11: #{tpu_custom_call.1} parent=5 // pred_region
        %s305 = ssub.s32 %s23, 1
        // Predicated region
        $region13: #{tpu_custom_call.1} parent=11 // pred_check
          %p306 = pneg %p56
        $region14: #{tpu_custom_call.1} parent=11 // pred_check_branch
          %308 = sbr.rel (%p306) target = $region16
        $region15: #{tpu_custom_call.1} parent=11 // pred_region
          %s310 = ssub.s32 1024, 1024
          %311 = vsyncadd [#allocation5], %s310
          %s312 = sshll.u32 [#allocation4], 4
          %s313 = int_to_ptr.vmem [resolvable:$true] %s312
          %318 = dma.hbm_to_vmem [thread:$0]  %s0, 1024, %s313, [#allocation5], 64, 64, 4
        $region16: #{tpu_custom_call.1} parent=11 // pred_fallthru
          _
        // Predicated region
        $region17: #{tpu_custom_call.1} parent=11 // pred_check
          %p319 = pneg %p82
        $region18: #{tpu_custom_call.1} parent=11 // pred_check_branch
          %321 = sbr.rel (%p319) target = $region20
        $region19: #{tpu_custom_call.1} parent=11 // pred_region
          %s322 = smul.u32 16, %s33
          %s324 = ssub.s32 1024, 1024
          %325 = vsyncadd [#allocation8], %s324
          %s326 = smul.addr %s322, 64
          %s327 = scalar_lea.hbm %s1, %s326
          %s328 = sshll.u32 [#allocation7], 4
          %s329 = int_to_ptr.vmem [resolvable:$true] %s328
          %334 = dma.hbm_to_vmem [thread:$0]  %s327, 1024, %s329, [#allocation8], 64, 64, 4
        $region20: #{tpu_custom_call.1} parent=11 // pred_fallthru
          _
        // Predicated region
        $region21: #{tpu_custom_call.1} parent=11 // pred_check
          %p335 = pneg %p103
        $region22: #{tpu_custom_call.1} parent=11 // pred_check_branch
          %337 = sbr.rel (%p335) target = $region24
        $region23: #{tpu_custom_call.1} parent=11 // pred_region
          %s339 = ssub.s32 1024, 1024
          %340 = vsyncadd [#allocation8], %s339
          %s341 = sshll.u32 [#allocation9], 4
          %s342 = int_to_ptr.vmem [resolvable:$true] %s341
          %347 = dma.hbm_to_vmem [thread:$0]  %s2, 1024, %s342, [#allocation8], 64, 64, 4
        $region24: #{tpu_custom_call.1} parent=11 // pred_fallthru
          _
        // Predicated region
        $region25: #{tpu_custom_call.1} parent=11 // pred_check
          %p348 = pneg %p124
        $region26: #{tpu_custom_call.1} parent=11 // pred_check_branch
          %350 = sbr.rel (%p348) target = $region28
        $region27: #{tpu_custom_call.1} parent=11 // pred_region
          _
        $region28: #{tpu_custom_call.1} parent=11 // pred_fallthru
          _
        // Predicated region
        $region29: #{tpu_custom_call.1} parent=11 // pred_check
          %p351 = pneg %p249
        $region30: #{tpu_custom_call.1} parent=11 // pred_check_branch
          %353 = sbr.rel (%p351) target = $region32
        $region31: #{tpu_custom_call.1} parent=11 // pred_region
          %s355 = ssub.s32 1024, 1024
          %356 = vsyncadd [#allocation14], %s355
          %s357 = sshll.u32 [#allocation13], 4
          %s358 = int_to_ptr.vmem [resolvable:$true] %s357
          %363 = dma.hbm_to_vmem [thread:$0]  %s8, 1024, %s358, [#allocation14], 64, 64, 4
        $region32: #{tpu_custom_call.1} parent=11 // pred_fallthru
          _
        // Predicated region
        $region33: #{tpu_custom_call.1} parent=11 // pred_check
          %p364 = pneg %p270
        $region34: #{tpu_custom_call.1} parent=11 // pred_check_branch
          %366 = sbr.rel (%p364) target = $region36
        $region35: #{tpu_custom_call.1} parent=11 // pred_region
          _
        $region36: #{tpu_custom_call.1} parent=11 // pred_fallthru
          _
      $region12: #{tpu_custom_call.1} parent=5 // pred_fallthru
        _
      %p367 = scmp.lt.s32.totalorder %s23, 2
      // Predicated region
      $region37: #{tpu_custom_call.1} parent=5 // pred_check
        %p368 = pneg %p367
      $region38: #{tpu_custom_call.1} parent=5 // pred_check_branch
        %370 = sbr.rel (%p368) target = $region40
      $region39: #{tpu_custom_call.1} parent=5 // pred_region
        // Predicated region
        $region41: #{tpu_custom_call.1} parent=39 // pred_check
          %p371 = pneg %p144
        $region42: #{tpu_custom_call.1} parent=39 // pred_check_branch
          %373 = sbr.rel (%p371) target = $region44
        $region43: #{tpu_custom_call.1} parent=39 // pred_region
          %s374 = sand.u32 %s23, 1
          %s375 = scalar_lea.sflag [#allocation11], %s374
          %s376 = sand.u32 %s134, 1
          %s377 = smul.addr %s376, 64
          %s378 = scalar_lea.vmem [#allocation10], %s377
          %s380 = ssub.s32 1024, 1024
          %381 = vsyncadd %s375, %s380
          %s382 = smul.addr %s30, 16
          %s383 = smul.addr %s382, 64
          %s384 = scalar_lea.hbm %s4, %s383
          %s385 = sshll.u32 %s378, 4
          %s386 = int_to_ptr.vmem [resolvable:$true] %s385
          %391 = dma.hbm_to_vmem [thread:$0]  %s384, 1024, %s386, %s375, 64, 64, 4
        $region44: #{tpu_custom_call.1} parent=39 // pred_fallthru
          _
        // Predicated region
        $region45: #{tpu_custom_call.1} parent=39 // pred_check
          %p392 = pneg %p170
        $region46: #{tpu_custom_call.1} parent=39 // pred_check_branch
          %394 = sbr.rel (%p392) target = $region48
        $region47: #{tpu_custom_call.1} parent=39 // pred_region
          %p395 = scmp.lt.s32.totalorder %s30, 1
          %s396 = scalar_select %p395, %s30, 1
          %s397 = scalar_lea.vmem %s5, %s396
        $region48: #{tpu_custom_call.1} parent=39 // pred_fallthru
          _
        // Predicated region
        $region49: #{tpu_custom_call.1} parent=39 // pred_check
          %p398 = pneg %p196
        $region50: #{tpu_custom_call.1} parent=39 // pred_check_branch
          %400 = sbr.rel (%p398) target = $region52
        $region51: #{tpu_custom_call.1} parent=39 // pred_region
          %s401 = sand.u32 %s23, 1
          %s402 = scalar_lea.sflag [#allocation11], %s401
          %s403 = sand.u32 %s186, 1
          %s404 = smul.addr %s403, 64
          %s405 = scalar_lea.vmem [#allocation12], %s404
          %s407 = ssub.s32 1024, 1024
          %408 = vsyncadd %s402, %s407
          %s409 = smul.addr %s30, 16
          %s410 = smul.addr %s409, 64
          %s411 = scalar_lea.hbm %s6, %s410
          %s412 = sshll.u32 %s405, 4
          %s413 = int_to_ptr.vmem [resolvable:$true] %s412
          %418 = dma.hbm_to_vmem [thread:$0]  %s411, 1024, %s413, %s402, 64, 64, 4
        $region52: #{tpu_custom_call.1} parent=39 // pred_fallthru
          _
        // Predicated region
        $region53: #{tpu_custom_call.1} parent=39 // pred_check
          %p419 = pneg %p222
        $region54: #{tpu_custom_call.1} parent=39 // pred_check_branch
          %421 = sbr.rel (%p419) target = $region56
        $region55: #{tpu_custom_call.1} parent=39 // pred_region
          %p422 = scmp.lt.s32.totalorder %s30, 1
          %s423 = scalar_select %p422, %s30, 1
          %s424 = scalar_lea.vmem %s7, %s423
        $region56: #{tpu_custom_call.1} parent=39 // pred_fallthru
          _
      $region40: #{tpu_custom_call.1} parent=5 // pred_fallthru
        _
      %p425 = scmp.le.s32.totalorder 1, %s23
      %p426 = scmp.lt.s32.totalorder %s23, 3
      %p427 = pnand %p425, %p426
      %p428 = pneg %p427
      // Predicated region
      $region57: #{tpu_custom_call.1} parent=5 // pred_check
        _
      $region58: #{tpu_custom_call.1} parent=5 // pred_check_branch
        %430 = sbr.rel (%p427) target = $region60
      $region59: #{tpu_custom_call.1} parent=5 // pred_region
        %s431 = ssub.s32 %s23, 1
        // Predicated region
        $region61: #{tpu_custom_call.1} parent=59 // pred_check
          %p432 = pneg %p56
        $region62: #{tpu_custom_call.1} parent=59 // pred_check_branch
          %434 = sbr.rel (%p432) target = $region64
        $region63: #{tpu_custom_call.1} parent=59 // pred_region
          %435 = dma.done [#allocation5], 1024
        $region64: #{tpu_custom_call.1} parent=59 // pred_fallthru
          _
        // Predicated region
        $region65: #{tpu_custom_call.1} parent=59 // pred_check
          %p436 = pneg %p82
        $region66: #{tpu_custom_call.1} parent=59 // pred_check_branch
          %438 = sbr.rel (%p436) target = $region68
        $region67: #{tpu_custom_call.1} parent=59 // pred_region
          %439 = dma.done [#allocation8], 1024
        $region68: #{tpu_custom_call.1} parent=59 // pred_fallthru
          _
        // Predicated region
        $region69: #{tpu_custom_call.1} parent=59 // pred_check
          %p440 = pneg %p103
        $region70: #{tpu_custom_call.1} parent=59 // pred_check_branch
          %442 = sbr.rel (%p440) target = $region72
        $region71: #{tpu_custom_call.1} parent=59 // pred_region
          %443 = dma.done [#allocation8], 1024
        $region72: #{tpu_custom_call.1} parent=59 // pred_fallthru
          _
        %s444 = sand.u32 %s28, 1
        %s445 = scalar_lea.sflag [#allocation11], %s444
        %s446 = sand.u32 %s137, 1
        %s447 = smul.addr %s446, 64
        %s448 = scalar_lea.vmem [#allocation10], %s447
        // Predicated region
        $region73: #{tpu_custom_call.1} parent=59 // pred_check
          %p449 = pneg %p150
        $region74: #{tpu_custom_call.1} parent=59 // pred_check_branch
          %451 = sbr.rel (%p449) target = $region76
        $region75: #{tpu_custom_call.1} parent=59 // pred_region
          %452 = dma.done %s445, 1024
        $region76: #{tpu_custom_call.1} parent=59 // pred_fallthru
          _
        %s453 = sand.u32 %s28, 1
        %s454 = scalar_lea.sflag [#allocation11], %s453
        %s455 = sand.u32 %s189, 1
        %s456 = smul.addr %s455, 64
        %s457 = scalar_lea.vmem [#allocation12], %s456
        // Predicated region
        $region77: #{tpu_custom_call.1} parent=59 // pred_check
          %p458 = pneg %p202
        $region78: #{tpu_custom_call.1} parent=59 // pred_check_branch
          %460 = sbr.rel (%p458) target = $region80
        $region79: #{tpu_custom_call.1} parent=59 // pred_region
          %461 = dma.done %s454, 1024
        $region80: #{tpu_custom_call.1} parent=59 // pred_fallthru
          _
        // Predicated region
        $region81: #{tpu_custom_call.1} parent=59 // pred_check
          %p462 = pneg %p249
        $region82: #{tpu_custom_call.1} parent=59 // pred_check_branch
          %464 = sbr.rel (%p462) target = $region84
        $region83: #{tpu_custom_call.1} parent=59 // pred_region
          %465 = dma.done [#allocation14], 1024
        $region84: #{tpu_custom_call.1} parent=59 // pred_fallthru
          _
        %p466 = pneg %p56
        %p467 = pneg %p53
        %p468 = pneg %p82
        %p469 = pneg %p79
        %p470 = pneg %p103
        %p471 = pneg %p100
        %p472 = pneg %p124
        %p473 = pneg %p121
        %s474 = sand.u32 %s28, 1
        %s475 = scalar_lea.sflag [#allocation11], %s474
        %s476 = sand.u32 %s137, 1
        %s477 = smul.addr %s476, 64
        %s478 = scalar_lea.vmem [#allocation10], %s477
        %p479 = pneg %p150
        %p480 = pneg %p147
        %p481 = scmp.lt.s32.totalorder %s32, 1
        %s482 = scalar_select %p481, %s32, 1
        %s483 = scalar_lea.vmem %s5, %s482
        %p484 = pneg %p176
        %p485 = pneg %p173
        %s486 = sand.u32 %s28, 1
        %s487 = scalar_lea.sflag [#allocation11], %s486
        %s488 = sand.u32 %s189, 1
        %s489 = smul.addr %s488, 64
        %s490 = scalar_lea.vmem [#allocation12], %s489
        %p491 = pneg %p202
        %p492 = pneg %p199
        %p493 = scmp.lt.s32.totalorder %s32, 1
        %s494 = scalar_select %p493, %s32, 1
        %s495 = scalar_lea.vmem %s7, %s494
        %p496 = pneg %p228
        %p497 = pneg %p225
        %p498 = pneg %p249
        %p499 = pneg %p246
        %p500 = pneg %p270
        %p501 = pneg %p267
        %p502 = pneg %p291
        %p503 = pneg %p288
        %s504 = smul.u32 16, %s33
        %p505 = scmp.lt.s32.totalorder %s32, 1
        %s506 = scalar_select %p505, %s32, 1
        %s507 = scalar_lea.vmem %s5, %s506
        %p508 = scmp.lt.s32.totalorder %s32, 1
        %s509 = scalar_select %p508, %s32, 1
        %s510 = scalar_lea.vmem %s7, %s509
        %p512 = scmp.eq.s32.totalorder %s32, 0
        %p513 = scmp.eq.s32.totalorder %s33, 0
        %p514 = pnand %p512, %p513
        %p515 = pneg %p514
        // Predicated region
        $region85: #{tpu_custom_call.1} parent=59 // pred_check
          _
        $region86: #{tpu_custom_call.1} parent=59 // pred_check_branch
          %517 = sbr.rel (%p514) target = $region88
        $region87: #{tpu_custom_call.1} parent=59 // pred_region
          %v518 = vld [vmem:[#allocation4] sm:$0xf]
          %v519 = vld [vmem:[#allocation4 + $0x4] sm:$0xf]
          %v520 = vld [vmem:[#allocation4 + $0x8] sm:$0xf]
          %v521 = vld [vmem:[#allocation4 + $0xc] sm:$0xf]
          %v522 = vld [vmem:[#allocation4 + $0x10] sm:$0xf]
          %v523 = vld [vmem:[#allocation4 + $0x14] sm:$0xf]
          %v524 = vld [vmem:[#allocation4 + $0x18] sm:$0xf]
          %v525 = vld [vmem:[#allocation4 + $0x1c] sm:$0xf]
          %v526 = vld [vmem:[#allocation4 + $0x20] sm:$0xf]
          %v527 = vld [vmem:[#allocation4 + $0x24] sm:$0xf]
          %v528 = vld [vmem:[#allocation4 + $0x28] sm:$0xf]
          %v529 = vld [vmem:[#allocation4 + $0x2c] sm:$0xf]
          %v530 = vld [vmem:[#allocation4 + $0x30] sm:$0xf]
          %v531 = vld [vmem:[#allocation4 + $0x34] sm:$0xf]
          %v532 = vld [vmem:[#allocation4 + $0x38] sm:$0xf]
          %v533 = vld [vmem:[#allocation4 + $0x3c] sm:$0xf]
          %v534 = vld [vmem:[#allocation9] sm:$0xf]
          %v535 = vld [vmem:[#allocation9 + $0x4] sm:$0xf]
          %v536 = vld [vmem:[#allocation9 + $0x8] sm:$0xf]
          %v537 = vld [vmem:[#allocation9 + $0xc] sm:$0xf]
          %v538 = vld [vmem:[#allocation9 + $0x10] sm:$0xf]
          %v539 = vld [vmem:[#allocation9 + $0x14] sm:$0xf]
          %v540 = vld [vmem:[#allocation9 + $0x18] sm:$0xf]
          %v541 = vld [vmem:[#allocation9 + $0x1c] sm:$0xf]
          %v542 = vld [vmem:[#allocation9 + $0x20] sm:$0xf]
          %v543 = vld [vmem:[#allocation9 + $0x24] sm:$0xf]
          %v544 = vld [vmem:[#allocation9 + $0x28] sm:$0xf]
          %v545 = vld [vmem:[#allocation9 + $0x2c] sm:$0xf]
          %v546 = vld [vmem:[#allocation9 + $0x30] sm:$0xf]
          %v547 = vld [vmem:[#allocation9 + $0x34] sm:$0xf]
          %v548 = vld [vmem:[#allocation9 + $0x38] sm:$0xf]
          %v549 = vld [vmem:[#allocation9 + $0x3c] sm:$0xf]
          %v550 = vld [vmem:[%s3] sm:$0x1]
          %v552 = vlaneseq
          %v553 = vshrl.u32 %v552, 7
          %v554 = vsub.s32 0, %v553
          %v555 = vrot.slane %v550, %v554
          %v573 = vunpack.c.l.b16 %v518
          %v574 = vunpack.c.l.b16 %v519
          %v575 = vunpack.c.l.b16 %v520
          %v576 = vunpack.c.l.b16 %v521
          %v577 = vunpack.c.l.b16 %v522
          %v578 = vunpack.c.l.b16 %v523
          %v579 = vunpack.c.l.b16 %v524
          %v580 = vunpack.c.l.b16 %v525
          %v581 = vunpack.c.l.b16 %v526
          %v582 = vunpack.c.l.b16 %v527
          %v583 = vunpack.c.l.b16 %v528
          %v584 = vunpack.c.l.b16 %v529
          %v585 = vunpack.c.l.b16 %v530
          %v586 = vunpack.c.l.b16 %v531
          %v587 = vunpack.c.l.b16 %v532
          %v588 = vunpack.c.l.b16 %v533
          %v589 = vpack.c.b16 %v574, %v573
          %v590 = vpack.c.b16 %v576, %v575
          %v591 = vpack.c.b16 %v578, %v577
          %v592 = vpack.c.b16 %v580, %v579
          %v593 = vpack.c.b16 %v582, %v581
          %v594 = vpack.c.b16 %v584, %v583
          %v595 = vpack.c.b16 %v586, %v585
          %v596 = vpack.c.b16 %v588, %v587
          %v621 = vunpack.c.l.b16 %v534
          %v622 = vunpack.c.l.b16 %v535
          %v623 = vunpack.c.l.b16 %v536
          %v624 = vunpack.c.l.b16 %v537
          %v625 = vunpack.c.l.b16 %v538
          %v626 = vunpack.c.l.b16 %v539
          %v627 = vunpack.c.l.b16 %v540
          %v628 = vunpack.c.l.b16 %v541
          %v629 = vunpack.c.l.b16 %v542
          %v630 = vunpack.c.l.b16 %v543
          %v631 = vunpack.c.l.b16 %v544
          %v632 = vunpack.c.l.b16 %v545
          %v633 = vunpack.c.l.b16 %v546
          %v634 = vunpack.c.l.b16 %v547
          %v635 = vunpack.c.l.b16 %v548
          %v636 = vunpack.c.l.b16 %v549
          %v637 = vpack.c.b16 %v622, %v621
          %v638 = vpack.c.b16 %v624, %v623
          %v639 = vpack.c.b16 %v626, %v625
          %v640 = vpack.c.b16 %v628, %v627
          %v641 = vpack.c.b16 %v630, %v629
          %v642 = vpack.c.b16 %v632, %v631
          %v643 = vpack.c.b16 %v634, %v633
          %v644 = vpack.c.b16 %v636, %v635
          %653 = vmatprep.subr.bf16.mxu0 0
          %654 = vmatpush1.bf16.msra.mxu0 %v637
          %655 = vmatprep.subr.bf16.mxu0 0
          %656 = vmatpush1.bf16.msra.mxu0 %v638
          %657 = vmatprep.subr.bf16.mxu0 0
          %658 = vmatpush1.bf16.msra.mxu0 %v639
          %659 = vmatprep.subr.bf16.mxu0 0
          %660 = vmatpush1.bf16.msra.mxu0 %v640
          %661 = vmatprep.subr.bf16.mxu0 0
          %662 = vmatpush1.bf16.msra.mxu0 %v641
          %663 = vmatprep.subr.bf16.mxu0 0
          %664 = vmatpush1.bf16.msra.mxu0 %v642
          %665 = vmatprep.subr.bf16.mxu0 0
          %666 = vmatpush1.bf16.msra.mxu0 %v643
          %667 = vmatprep.subr.bf16.mxu0 0
          %668 = vmatpush1.bf16.msra.mxu0 %v644
          %669 = vmatprep.subr.bf16.mxu0 0
          %670 = vmatpush1.bf16.msra.mxu0 0
          %671 = vmatprep.subr.bf16.mxu0 0
          %672 = vmatpush1.bf16.msra.mxu0 0
          %673 = vmatprep.subr.bf16.mxu0 0
          %674 = vmatpush1.bf16.msra.mxu0 0
          %675 = vmatprep.subr.bf16.mxu0 0
          %676 = vmatpush1.bf16.msra.mxu0 0
          %677 = vmatprep.subr.bf16.mxu0 0
          %678 = vmatpush1.bf16.msra.mxu0 0
          %679 = vmatprep.subr.bf16.mxu0 0
          %680 = vmatpush1.bf16.msra.mxu0 0
          %681 = vmatprep.subr.bf16.mxu0 0
          %682 = vmatpush1.bf16.msra.mxu0 0
          %683 = vmatprep.subr.bf16.mxu0 0
          %684 = vmatpush1.bf16.msra.mxu0 0
          %685 = vmatprep.mubr.bf16.mxu0 0
          %686 = vmatmul.mubr.bf16.gmra.mrb[0].mxu0 %v589
          %v687 = vpop.f32.mrb[0].mxu0
          %v688 = vadd.f32 %v555, %v687
          %v689 = vpop.f32.mrb[0].mxu0
          %v690 = vpop.f32.mrb[0].mxu0
          %v691 = vadd.f32 %v555, %v690
          %v692 = vpop.f32.mrb[0].mxu0
          %693 = vmatprep.mubr.bf16.mxu0 0
          %694 = vmatmul.mubr.bf16.gmra.mrb[0].mxu0 %v590
          %v695 = vpop.f32.mrb[0].mxu0
          %v696 = vadd.f32 %v555, %v695
          %v697 = vpop.f32.mrb[0].mxu0
          %v698 = vpop.f32.mrb[0].mxu0
          %v699 = vadd.f32 %v555, %v698
          %v700 = vpop.f32.mrb[0].mxu0
          %701 = vmatprep.mubr.bf16.mxu0 0
          %702 = vmatmul.mubr.bf16.gmra.mrb[0].mxu0 %v591
          %v703 = vpop.f32.mrb[0].mxu0
          %v704 = vadd.f32 %v555, %v703
          %v705 = vpop.f32.mrb[0].mxu0
          %v706 = vpop.f32.mrb[0].mxu0
          %v707 = vadd.f32 %v555, %v706
          %v708 = vpop.f32.mrb[0].mxu0
          %709 = vmatprep.mubr.bf16.mxu0 0
          %710 = vmatmul.mubr.bf16.gmra.mrb[0].mxu0 %v592
          %v711 = vpop.f32.mrb[0].mxu0
          %v712 = vadd.f32 %v555, %v711
          %v713 = vpop.f32.mrb[0].mxu0
          %v714 = vpop.f32.mrb[0].mxu0
          %v715 = vadd.f32 %v555, %v714
          %v716 = vpop.f32.mrb[0].mxu0
          %717 = vmatprep.mubr.bf16.mxu0 0
          %718 = vmatmul.mubr.bf16.gmra.mrb[0].mxu0 %v593
          %v719 = vpop.f32.mrb[0].mxu0
          %v720 = vadd.f32 %v555, %v719
          %v721 = vpop.f32.mrb[0].mxu0
          %v722 = vpop.f32.mrb[0].mxu0
          %v723 = vadd.f32 %v555, %v722
          %v724 = vpop.f32.mrb[0].mxu0
          %725 = vmatprep.mubr.bf16.mxu0 0
          %726 = vmatmul.mubr.bf16.gmra.mrb[0].mxu0 %v594
          %v727 = vpop.f32.mrb[0].mxu0
          %v728 = vadd.f32 %v555, %v727
          %v729 = vpop.f32.mrb[0].mxu0
          %v730 = vpop.f32.mrb[0].mxu0
          %v731 = vadd.f32 %v555, %v730
          %v732 = vpop.f32.mrb[0].mxu0
          %733 = vmatprep.mubr.bf16.mxu0 0
          %734 = vmatmul.mubr.bf16.gmra.mrb[0].mxu0 %v595
          %v735 = vpop.f32.mrb[0].mxu0
          %v736 = vadd.f32 %v555, %v735
          %v737 = vpop.f32.mrb[0].mxu0
          %v738 = vpop.f32.mrb[0].mxu0
          %v739 = vadd.f32 %v555, %v738
          %v740 = vpop.f32.mrb[0].mxu0
          %741 = vmatprep.mubr.bf16.mxu0 0
          %742 = vmatmul.mubr.bf16.gmra.mrb[0].mxu0 %v596
          %v743 = vpop.f32.mrb[0].mxu0
          %v744 = vadd.f32 %v555, %v743
          %v745 = vpop.f32.mrb[0].mxu0
          %v746 = vpop.f32.mrb[0].mxu0
          %v747 = vadd.f32 %v555, %v746
          %v748 = vpop.f32.mrb[0].mxu0
          %749 = vdwg.mxu0
          %750 = vst [vmem:[#allocation2] sm:$0xff] %v688
          %751 = vst [vmem:[#allocation2 + $0x8] sm:$0xff] %v691
          %752 = vst [vmem:[#allocation2 + $0x10] sm:$0xff] %v696
          %753 = vst [vmem:[#allocation2 + $0x18] sm:$0xff] %v699
          %754 = vst [vmem:[#allocation2 + $0x20] sm:$0xff] %v704
          %755 = vst [vmem:[#allocation2 + $0x28] sm:$0xff] %v707
          %756 = vst [vmem:[#allocation2 + $0x30] sm:$0xff] %v712
          %757 = vst [vmem:[#allocation2 + $0x38] sm:$0xff] %v715
          %758 = vst [vmem:[#allocation2 + $0x40] sm:$0xff] %v720
          %759 = vst [vmem:[#allocation2 + $0x48] sm:$0xff] %v723
          %760 = vst [vmem:[#allocation2 + $0x50] sm:$0xff] %v728
          %761 = vst [vmem:[#allocation2 + $0x58] sm:$0xff] %v731
          %762 = vst [vmem:[#allocation2 + $0x60] sm:$0xff] %v736
          %763 = vst [vmem:[#allocation2 + $0x68] sm:$0xff] %v739
          %764 = vst [vmem:[#allocation2 + $0x70] sm:$0xff] %v744
          %765 = vst [vmem:[#allocation2 + $0x78] sm:$0xff] %v747
        $region88: #{tpu_custom_call.1} parent=59 // pred_fallthru
          _
        // Predicated region
        $region89: #{tpu_custom_call.1} parent=59 // pred_check
          %p766 = pneg %p513
        $region90: #{tpu_custom_call.1} parent=59 // pred_check_branch
          %768 = sbr.rel (%p766) target = $region92
        $region91: #{tpu_custom_call.1} parent=59 // pred_region
          %v769 = vld [vmem:[#allocation2] sm:$0xff]
          %v770 = vld [vmem:[#allocation2 + $0x8] sm:$0xff]
          %v771 = vld [vmem:[#allocation2 + $0x10] sm:$0xff]
          %v772 = vld [vmem:[#allocation2 + $0x18] sm:$0xff]
          %v773 = vld [vmem:[#allocation2 + $0x20] sm:$0xff]
          %v774 = vld [vmem:[#allocation2 + $0x28] sm:$0xff]
          %v775 = vld [vmem:[#allocation2 + $0x30] sm:$0xff]
          %v776 = vld [vmem:[#allocation2 + $0x38] sm:$0xff]
          %v777 = vld [vmem:[#allocation2 + $0x40] sm:$0xff]
          %v778 = vld [vmem:[#allocation2 + $0x48] sm:$0xff]
          %v779 = vld [vmem:[#allocation2 + $0x50] sm:$0xff]
          %v780 = vld [vmem:[#allocation2 + $0x58] sm:$0xff]
          %v781 = vld [vmem:[#allocation2 + $0x60] sm:$0xff]
          %v782 = vld [vmem:[#allocation2 + $0x68] sm:$0xff]
          %v783 = vld [vmem:[#allocation2 + $0x70] sm:$0xff]
          %v784 = vld [vmem:[#allocation2 + $0x78] sm:$0xff]
          %v785 = vpack.c.bf16 %v770, %v769
          %v786 = vpack.c.bf16 %v772, %v771
          %v787 = vpack.c.bf16 %v774, %v773
          %v788 = vpack.c.bf16 %v776, %v775
          %v789 = vpack.c.bf16 %v778, %v777
          %v790 = vpack.c.bf16 %v780, %v779
          %v791 = vpack.c.bf16 %v782, %v781
          %v792 = vpack.c.bf16 %v784, %v783
          %v793 = vld [vmem:[%s448] sm:$0xf]
          %v794 = vld [vmem:[%s448 + $0x4] sm:$0xf]
          %v795 = vld [vmem:[%s448 + $0x8] sm:$0xf]
          %v796 = vld [vmem:[%s448 + $0xc] sm:$0xf]
          %v797 = vld [vmem:[%s448 + $0x10] sm:$0xf]
          %v798 = vld [vmem:[%s448 + $0x14] sm:$0xf]
          %v799 = vld [vmem:[%s448 + $0x18] sm:$0xf]
          %v800 = vld [vmem:[%s448 + $0x1c] sm:$0xf]
          %v801 = vld [vmem:[%s448 + $0x20] sm:$0xf]
          %v802 = vld [vmem:[%s448 + $0x24] sm:$0xf]
          %v803 = vld [vmem:[%s448 + $0x28] sm:$0xf]
          %v804 = vld [vmem:[%s448 + $0x2c] sm:$0xf]
          %v805 = vld [vmem:[%s448 + $0x30] sm:$0xf]
          %v806 = vld [vmem:[%s448 + $0x34] sm:$0xf]
          %v807 = vld [vmem:[%s448 + $0x38] sm:$0xf]
          %v808 = vld [vmem:[%s448 + $0x3c] sm:$0xf]
          %v809 = vld [vmem:[%s507] sm:$0x1]
          %v811 = vlaneseq
          %v812 = vshrl.u32 %v811, 7
          %v813 = vsub.s32 0, %v812
          %v814 = vrot.slane %v809, %v813
          %v832 = vunpack.c.l.b16 %v793
          %v833 = vunpack.c.l.b16 %v794
          %v834 = vunpack.c.l.b16 %v795
          %v835 = vunpack.c.l.b16 %v796
          %v836 = vunpack.c.l.b16 %v797
          %v837 = vunpack.c.l.b16 %v798
          %v838 = vunpack.c.l.b16 %v799
          %v839 = vunpack.c.l.b16 %v800
          %v840 = vunpack.c.l.b16 %v801
          %v841 = vunpack.c.l.b16 %v802
          %v842 = vunpack.c.l.b16 %v803
          %v843 = vunpack.c.l.b16 %v804
          %v844 = vunpack.c.l.b16 %v805
          %v845 = vunpack.c.l.b16 %v806
          %v846 = vunpack.c.l.b16 %v807
          %v847 = vunpack.c.l.b16 %v808
          %v848 = vpack.c.b16 %v833, %v832
          %v849 = vpack.c.b16 %v835, %v834
          %v850 = vpack.c.b16 %v837, %v836
          %v851 = vpack.c.b16 %v839, %v838
          %v852 = vpack.c.b16 %v841, %v840
          %v853 = vpack.c.b16 %v843, %v842
          %v854 = vpack.c.b16 %v845, %v844
          %v855 = vpack.c.b16 %v847, %v846
          %864 = vmatprep.subr.bf16.mxu0 0
          %865 = vmatpush1.bf16.msra.mxu0 %v848
          %866 = vmatprep.subr.bf16.mxu0 0
          %867 = vmatpush1.bf16.msra.mxu0 %v849
          %868 = vmatprep.subr.bf16.mxu0 0
          %869 = vmatpush1.bf16.msra.mxu0 %v850
          %870 = vmatprep.subr.bf16.mxu0 0
          %871 = vmatpush1.bf16.msra.mxu0 %v851
          %872 = vmatprep.subr.bf16.mxu0 0
          %873 = vmatpush1.bf16.msra.mxu0 %v852
          %874 = vmatprep.subr.bf16.mxu0 0
          %875 = vmatpush1.bf16.msra.mxu0 %v853
          %876 = vmatprep.subr.bf16.mxu0 0
          %877 = vmatpush1.bf16.msra.mxu0 %v854
          %878 = vmatprep.subr.bf16.mxu0 0
          %879 = vmatpush1.bf16.msra.mxu0 %v855
          %880 = vmatprep.subr.bf16.mxu0 0
          %881 = vmatpush1.bf16.msra.mxu0 0
          %882 = vmatprep.subr.bf16.mxu0 0
          %883 = vmatpush1.bf16.msra.mxu0 0
          %884 = vmatprep.subr.bf16.mxu0 0
          %885 = vmatpush1.bf16.msra.mxu0 0
          %886 = vmatprep.subr.bf16.mxu0 0
          %887 = vmatpush1.bf16.msra.mxu0 0
          %888 = vmatprep.subr.bf16.mxu0 0
          %889 = vmatpush1.bf16.msra.mxu0 0
          %890 = vmatprep.subr.bf16.mxu0 0
          %891 = vmatpush1.bf16.msra.mxu0 0
          %892 = vmatprep.subr.bf16.mxu0 0
          %893 = vmatpush1.bf16.msra.mxu0 0
          %894 = vmatprep.subr.bf16.mxu0 0
          %895 = vmatpush1.bf16.msra.mxu0 0
          %896 = vmatprep.mubr.bf16.mxu0 0
          %897 = vmatmul.mubr.bf16.gmra.mrb[0].mxu0 %v785
          %v898 = vpop.f32.mrb[0].mxu0
          %v899 = vadd.f32 %v814, %v898
          %v900 = vpop.f32.mrb[0].mxu0
          %v901 = vpop.f32.mrb[0].mxu0
          %v902 = vadd.f32 %v814, %v901
          %v903 = vpop.f32.mrb[0].mxu0
          %904 = vmatprep.mubr.bf16.mxu0 0
          %905 = vmatmul.mubr.bf16.gmra.mrb[0].mxu0 %v786
          %v906 = vpop.f32.mrb[0].mxu0
          %v907 = vadd.f32 %v814, %v906
          %v908 = vpop.f32.mrb[0].mxu0
          %v909 = vpop.f32.mrb[0].mxu0
          %v910 = vadd.f32 %v814, %v909
          %v911 = vpop.f32.mrb[0].mxu0
          %912 = vmatprep.mubr.bf16.mxu0 0
          %913 = vmatmul.mubr.bf16.gmra.mrb[0].mxu0 %v787
          %v914 = vpop.f32.mrb[0].mxu0
          %v915 = vadd.f32 %v814, %v914
          %v916 = vpop.f32.mrb[0].mxu0
          %v917 = vpop.f32.mrb[0].mxu0
          %v918 = vadd.f32 %v814, %v917
          %v919 = vpop.f32.mrb[0].mxu0
          %920 = vmatprep.mubr.bf16.mxu0 0
          %921 = vmatmul.mubr.bf16.gmra.mrb[0].mxu0 %v788
          %v922 = vpop.f32.mrb[0].mxu0
          %v923 = vadd.f32 %v814, %v922
          %v924 = vpop.f32.mrb[0].mxu0
          %v925 = vpop.f32.mrb[0].mxu0
          %v926 = vadd.f32 %v814, %v925
          %v927 = vpop.f32.mrb[0].mxu0
          %928 = vmatprep.mubr.bf16.mxu0 0
          %929 = vmatmul.mubr.bf16.gmra.mrb[0].mxu0 %v789
          %v930 = vpop.f32.mrb[0].mxu0
          %v931 = vadd.f32 %v814, %v930
          %v932 = vpop.f32.mrb[0].mxu0
          %v933 = vpop.f32.mrb[0].mxu0
          %v934 = vadd.f32 %v814, %v933
          %v935 = vpop.f32.mrb[0].mxu0
          %936 = vmatprep.mubr.bf16.mxu0 0
          %937 = vmatmul.mubr.bf16.gmra.mrb[0].mxu0 %v790
          %v938 = vpop.f32.mrb[0].mxu0
          %v939 = vadd.f32 %v814, %v938
          %v940 = vpop.f32.mrb[0].mxu0
          %v941 = vpop.f32.mrb[0].mxu0
          %v942 = vadd.f32 %v814, %v941
          %v943 = vpop.f32.mrb[0].mxu0
          %944 = vmatprep.mubr.bf16.mxu0 0
          %945 = vmatmul.mubr.bf16.gmra.mrb[0].mxu0 %v791
          %v946 = vpop.f32.mrb[0].mxu0
          %v947 = vadd.f32 %v814, %v946
          %v948 = vpop.f32.mrb[0].mxu0
          %v949 = vpop.f32.mrb[0].mxu0
          %v950 = vadd.f32 %v814, %v949
          %v951 = vpop.f32.mrb[0].mxu0
          %952 = vmatprep.mubr.bf16.mxu0 0
          %953 = vmatmul.mubr.bf16.gmra.mrb[0].mxu0 %v792
          %v954 = vpop.f32.mrb[0].mxu0
          %v955 = vadd.f32 %v814, %v954
          %v956 = vpop.f32.mrb[0].mxu0
          %v957 = vpop.f32.mrb[0].mxu0
          %v958 = vadd.f32 %v814, %v957
          %v959 = vpop.f32.mrb[0].mxu0
          %960 = vdwg.mxu0
          %v961 = vmul.f32 %v899, %v899
          %v962 = vmul.f32 %v902, %v902
          %v963 = vmul.f32 %v907, %v907
          %v964 = vmul.f32 %v910, %v910
          %v965 = vmul.f32 %v915, %v915
          %v966 = vmul.f32 %v918, %v918
          %v967 = vmul.f32 %v923, %v923
          %v968 = vmul.f32 %v926, %v926
          %v969 = vmul.f32 %v931, %v931
          %v970 = vmul.f32 %v934, %v934
          %v971 = vmul.f32 %v939, %v939
          %v972 = vmul.f32 %v942, %v942
          %v973 = vmul.f32 %v947, %v947
          %v974 = vmul.f32 %v950, %v950
          %v975 = vmul.f32 %v955, %v955
          %v976 = vmul.f32 %v958, %v958
          %v977 = vmul.f32 %v899, %v961
          %v978 = vmul.f32 %v902, %v962
          %v979 = vmul.f32 %v907, %v963
          %v980 = vmul.f32 %v910, %v964
          %v981 = vmul.f32 %v915, %v965
          %v982 = vmul.f32 %v918, %v966
          %v983 = vmul.f32 %v923, %v967
          %v984 = vmul.f32 %v926, %v968
          %v985 = vmul.f32 %v931, %v969
          %v986 = vmul.f32 %v934, %v970
          %v987 = vmul.f32 %v939, %v971
          %v988 = vmul.f32 %v942, %v972
          %v989 = vmul.f32 %v947, %v973
          %v990 = vmul.f32 %v950, %v974
          %v991 = vmul.f32 %v955, %v975
          %v992 = vmul.f32 %v958, %v976
          %v993 = vmul.f32 %v977, 0.044715
          %v994 = vmul.f32 %v978, 0.044715
          %v995 = vmul.f32 %v979, 0.044715
          %v996 = vmul.f32 %v980, 0.044715
          %v997 = vmul.f32 %v981, 0.044715
          %v998 = vmul.f32 %v982, 0.044715
          %v999 = vmul.f32 %v983, 0.044715
          %v1000 = vmul.f32 %v984, 0.044715
          %v1001 = vmul.f32 %v985, 0.044715
          %v1002 = vmul.f32 %v986, 0.044715
          %v1003 = vmul.f32 %v987, 0.044715
          %v1004 = vmul.f32 %v988, 0.044715
          %v1005 = vmul.f32 %v989, 0.044715
          %v1006 = vmul.f32 %v990, 0.044715
          %v1007 = vmul.f32 %v991, 0.044715
          %v1008 = vmul.f32 %v992, 0.044715
          %v1009 = vadd.f32 %v899, %v993
          %v1010 = vadd.f32 %v902, %v994
          %v1011 = vadd.f32 %v907, %v995
          %v1012 = vadd.f32 %v910, %v996
          %v1013 = vadd.f32 %v915, %v997
          %v1014 = vadd.f32 %v918, %v998
          %v1015 = vadd.f32 %v923, %v999
          %v1016 = vadd.f32 %v926, %v1000
          %v1017 = vadd.f32 %v931, %v1001
          %v1018 = vadd.f32 %v934, %v1002
          %v1019 = vadd.f32 %v939, %v1003
          %v1020 = vadd.f32 %v942, %v1004
          %v1021 = vadd.f32 %v947, %v1005
          %v1022 = vadd.f32 %v950, %v1006
          %v1023 = vadd.f32 %v955, %v1007
          %v1024 = vadd.f32 %v958, %v1008
          %v1025 = vmul.f32 %v1009, 0.7978846
          %v1026 = vmul.f32 %v1010, 0.7978846
          %v1027 = vmul.f32 %v1011, 0.7978846
          %v1028 = vmul.f32 %v1012, 0.7978846
          %v1029 = vmul.f32 %v1013, 0.7978846
          %v1030 = vmul.f32 %v1014, 0.7978846
          %v1031 = vmul.f32 %v1015, 0.7978846
          %v1032 = vmul.f32 %v1016, 0.7978846
          %v1033 = vmul.f32 %v1017, 0.7978846
          %v1034 = vmul.f32 %v1018, 0.7978846
          %v1035 = vmul.f32 %v1019, 0.7978846
          %v1036 = vmul.f32 %v1020, 0.7978846
          %v1037 = vmul.f32 %v1021, 0.7978846
          %v1038 = vmul.f32 %v1022, 0.7978846
          %v1039 = vmul.f32 %v1023, 0.7978846
          %v1040 = vmul.f32 %v1024, 0.7978846
          %v1041 = vtanh.pop %v1025
          %v1042 = vtanh.pop %v1026
          %v1043 = vtanh.pop %v1027
          %v1044 = vtanh.pop %v1028
          %v1045 = vtanh.pop %v1029
          %v1046 = vtanh.pop %v1030
          %v1047 = vtanh.pop %v1031
          %v1048 = vtanh.pop %v1032
          %v1049 = vtanh.pop %v1033
          %v1050 = vtanh.pop %v1034
          %v1051 = vtanh.pop %v1035
          %v1052 = vtanh.pop %v1036
          %v1053 = vtanh.pop %v1037
          %v1054 = vtanh.pop %v1038
          %v1055 = vtanh.pop %v1039
          %v1056 = vtanh.pop %v1040
          %v1057 = vadd.f32 %v1041, 1.0
          %v1058 = vadd.f32 %v1042, 1.0
          %v1059 = vadd.f32 %v1043, 1.0
          %v1060 = vadd.f32 %v1044, 1.0
          %v1061 = vadd.f32 %v1045, 1.0
          %v1062 = vadd.f32 %v1046, 1.0
          %v1063 = vadd.f32 %v1047, 1.0
          %v1064 = vadd.f32 %v1048, 1.0
          %v1065 = vadd.f32 %v1049, 1.0
          %v1066 = vadd.f32 %v1050, 1.0
          %v1067 = vadd.f32 %v1051, 1.0
          %v1068 = vadd.f32 %v1052, 1.0
          %v1069 = vadd.f32 %v1053, 1.0
          %v1070 = vadd.f32 %v1054, 1.0
          %v1071 = vadd.f32 %v1055, 1.0
          %v1072 = vadd.f32 %v1056, 1.0
          %v1073 = vmul.f32 %v1057, 0.5
          %v1074 = vmul.f32 %v1058, 0.5
          %v1075 = vmul.f32 %v1059, 0.5
          %v1076 = vmul.f32 %v1060, 0.5
          %v1077 = vmul.f32 %v1061, 0.5
          %v1078 = vmul.f32 %v1062, 0.5
          %v1079 = vmul.f32 %v1063, 0.5
          %v1080 = vmul.f32 %v1064, 0.5
          %v1081 = vmul.f32 %v1065, 0.5
          %v1082 = vmul.f32 %v1066, 0.5
          %v1083 = vmul.f32 %v1067, 0.5
          %v1084 = vmul.f32 %v1068, 0.5
          %v1085 = vmul.f32 %v1069, 0.5
          %v1086 = vmul.f32 %v1070, 0.5
          %v1087 = vmul.f32 %v1071, 0.5
          %v1088 = vmul.f32 %v1072, 0.5
          %v1089 = vmul.f32 %v899, %v1073
          %v1090 = vmul.f32 %v902, %v1074
          %v1091 = vmul.f32 %v907, %v1075
          %v1092 = vmul.f32 %v910, %v1076
          %v1093 = vmul.f32 %v915, %v1077
          %v1094 = vmul.f32 %v918, %v1078
          %v1095 = vmul.f32 %v923, %v1079
          %v1096 = vmul.f32 %v926, %v1080
          %v1097 = vmul.f32 %v931, %v1081
          %v1098 = vmul.f32 %v934, %v1082
          %v1099 = vmul.f32 %v939, %v1083
          %v1100 = vmul.f32 %v942, %v1084
          %v1101 = vmul.f32 %v947, %v1085
          %v1102 = vmul.f32 %v950, %v1086
          %v1103 = vmul.f32 %v955, %v1087
          %v1104 = vmul.f32 %v958, %v1088
          %v1105 = vpack.c.bf16 %v1090, %v1089
          %v1106 = vpack.c.bf16 %v1092, %v1091
          %v1107 = vpack.c.bf16 %v1094, %v1093
          %v1108 = vpack.c.bf16 %v1096, %v1095
          %v1109 = vpack.c.bf16 %v1098, %v1097
          %v1110 = vpack.c.bf16 %v1100, %v1099
          %v1111 = vpack.c.bf16 %v1102, %v1101
          %v1112 = vpack.c.bf16 %v1104, %v1103
          %1113 = vst [vmem:[#allocation3] sm:$0xff] %v1105
          %1114 = vst [vmem:[#allocation3 + $0x8] sm:$0xff] %v1106
          %1115 = vst [vmem:[#allocation3 + $0x10] sm:$0xff] %v1107
          %1116 = vst [vmem:[#allocation3 + $0x18] sm:$0xff] %v1108
          %1117 = vst [vmem:[#allocation3 + $0x20] sm:$0xff] %v1109
          %1118 = vst [vmem:[#allocation3 + $0x28] sm:$0xff] %v1110
          %1119 = vst [vmem:[#allocation3 + $0x30] sm:$0xff] %v1111
          %1120 = vst [vmem:[#allocation3 + $0x38] sm:$0xff] %v1112
        $region92: #{tpu_custom_call.1} parent=59 // pred_fallthru
          _
        %s1121 = smul.u32 %s33, 128
        %v1122 = vld [vmem:[#allocation7] sm:$0xf]
        %v1123 = vld [vmem:[#allocation7 + $0x4] sm:$0xf]
        %v1124 = vld [vmem:[#allocation7 + $0x8] sm:$0xf]
        %v1125 = vld [vmem:[#allocation7 + $0xc] sm:$0xf]
        %v1126 = vld [vmem:[#allocation7 + $0x10] sm:$0xf]
        %v1127 = vld [vmem:[#allocation7 + $0x14] sm:$0xf]
        %v1128 = vld [vmem:[#allocation7 + $0x18] sm:$0xf]
        %v1129 = vld [vmem:[#allocation7 + $0x1c] sm:$0xf]
        %v1130 = vld [vmem:[#allocation7 + $0x20] sm:$0xf]
        %v1131 = vld [vmem:[#allocation7 + $0x24] sm:$0xf]
        %v1132 = vld [vmem:[#allocation7 + $0x28] sm:$0xf]
        %v1133 = vld [vmem:[#allocation7 + $0x2c] sm:$0xf]
        %v1134 = vld [vmem:[#allocation7 + $0x30] sm:$0xf]
        %v1135 = vld [vmem:[#allocation7 + $0x34] sm:$0xf]
        %v1136 = vld [vmem:[#allocation7 + $0x38] sm:$0xf]
        %v1137 = vld [vmem:[#allocation7 + $0x3c] sm:$0xf]
        %v1138 = vld [vmem:[#allocation3] sm:$0xff]
        %v1139 = vld [vmem:[#allocation3 + $0x8] sm:$0xff]
        %v1140 = vld [vmem:[#allocation3 + $0x10] sm:$0xff]
        %v1141 = vld [vmem:[#allocation3 + $0x18] sm:$0xff]
        %v1142 = vld [vmem:[#allocation3 + $0x20] sm:$0xff]
        %v1143 = vld [vmem:[#allocation3 + $0x28] sm:$0xff]
        %v1144 = vld [vmem:[#allocation3 + $0x30] sm:$0xff]
        %v1145 = vld [vmem:[#allocation3 + $0x38] sm:$0xff]
        %v1162 = vunpack.c.l.b16 %v1122
        %v1163 = vunpack.c.l.b16 %v1123
        %v1164 = vunpack.c.l.b16 %v1124
        %v1165 = vunpack.c.l.b16 %v1125
        %v1166 = vunpack.c.l.b16 %v1126
        %v1167 = vunpack.c.l.b16 %v1127
        %v1168 = vunpack.c.l.b16 %v1128
        %v1169 = vunpack.c.l.b16 %v1129
        %v1170 = vunpack.c.l.b16 %v1130
        %v1171 = vunpack.c.l.b16 %v1131
        %v1172 = vunpack.c.l.b16 %v1132
        %v1173 = vunpack.c.l.b16 %v1133
        %v1174 = vunpack.c.l.b16 %v1134
        %v1175 = vunpack.c.l.b16 %v1135
        %v1176 = vunpack.c.l.b16 %v1136
        %v1177 = vunpack.c.l.b16 %v1137
        %v1178 = vpack.c.b16 %v1163, %v1162
        %v1179 = vpack.c.b16 %v1165, %v1164
        %v1180 = vpack.c.b16 %v1167, %v1166
        %v1181 = vpack.c.b16 %v1169, %v1168
        %v1182 = vpack.c.b16 %v1171, %v1170
        %v1183 = vpack.c.b16 %v1173, %v1172
        %v1184 = vpack.c.b16 %v1175, %v1174
        %v1185 = vpack.c.b16 %v1177, %v1176
        %1194 = vmatprep.subr.bf16.mxu0 0
        %1195 = vmatpush1.bf16.msra.mxu0 %v1138
        %1196 = vmatprep.subr.bf16.mxu0 0
        %1197 = vmatpush1.bf16.msra.mxu0 %v1139
        %1198 = vmatprep.subr.bf16.mxu0 0
        %1199 = vmatpush1.bf16.msra.mxu0 %v1140
        %1200 = vmatprep.subr.bf16.mxu0 0
        %1201 = vmatpush1.bf16.msra.mxu0 %v1141
        %1202 = vmatprep.subr.bf16.mxu0 0
        %1203 = vmatpush1.bf16.msra.mxu0 %v1142
        %1204 = vmatprep.subr.bf16.mxu0 0
        %1205 = vmatpush1.bf16.msra.mxu0 %v1143
        %1206 = vmatprep.subr.bf16.mxu0 0
        %1207 = vmatpush1.bf16.msra.mxu0 %v1144
        %1208 = vmatprep.subr.bf16.mxu0 0
        %1209 = vmatpush1.bf16.msra.mxu0 %v1145
        %1210 = vmatprep.subr.bf16.mxu0 0
        %1211 = vmatpush1.bf16.msra.mxu0 0
        %1212 = vmatprep.subr.bf16.mxu0 0
        %1213 = vmatpush1.bf16.msra.mxu0 0
        %1214 = vmatprep.subr.bf16.mxu0 0
        %1215 = vmatpush1.bf16.msra.mxu0 0
        %1216 = vmatprep.subr.bf16.mxu0 0
        %1217 = vmatpush1.bf16.msra.mxu0 0
        %1218 = vmatprep.subr.bf16.mxu0 0
        %1219 = vmatpush1.bf16.msra.mxu0 0
        %1220 = vmatprep.subr.bf16.mxu0 0
        %1221 = vmatpush1.bf16.msra.mxu0 0
        %1222 = vmatprep.subr.bf16.mxu0 0
        %1223 = vmatpush1.bf16.msra.mxu0 0
        %1224 = vmatprep.subr.bf16.mxu0 0
        %1225 = vmatpush1.bf16.msra.mxu0 0
        %1226 = vmatprep.mubr.bf16.mxu0 0
        %1227 = vmatmul.mubr.bf16.gmra.mrb[0].mxu0 %v1178
        %v1228 = vpop.f32.mrb[0].mxu0
        %v1229 = vadd.f32 0.0, %v1228
        %v1230 = vpop.f32.mrb[0].mxu0
        %v1231 = vpop.f32.mrb[0].mxu0
        %v1232 = vadd.f32 0.0, %v1231
        %v1233 = vpop.f32.mrb[0].mxu0
        %1234 = vmatprep.mubr.bf16.mxu0 0
        %1235 = vmatmul.mubr.bf16.gmra.mrb[0].mxu0 %v1179
        %v1236 = vpop.f32.mrb[0].mxu0
        %v1237 = vadd.f32 0.0, %v1236
        %v1238 = vpop.f32.mrb[0].mxu0
        %v1239 = vpop.f32.mrb[0].mxu0
        %v1240 = vadd.f32 0.0, %v1239
        %v1241 = vpop.f32.mrb[0].mxu0
        %1242 = vmatprep.mubr.bf16.mxu0 0
        %1243 = vmatmul.mubr.bf16.gmra.mrb[0].mxu0 %v1180
        %v1244 = vpop.f32.mrb[0].mxu0
        %v1245 = vadd.f32 0.0, %v1244
        %v1246 = vpop.f32.mrb[0].mxu0
        %v1247 = vpop.f32.mrb[0].mxu0
        %v1248 = vadd.f32 0.0, %v1247
        %v1249 = vpop.f32.mrb[0].mxu0
        %1250 = vmatprep.mubr.bf16.mxu0 0
        %1251 = vmatmul.mubr.bf16.gmra.mrb[0].mxu0 %v1181
        %v1252 = vpop.f32.mrb[0].mxu0
        %v1253 = vadd.f32 0.0, %v1252
        %v1254 = vpop.f32.mrb[0].mxu0
        %v1255 = vpop.f32.mrb[0].mxu0
        %v1256 = vadd.f32 0.0, %v1255
        %v1257 = vpop.f32.mrb[0].mxu0
        %1258 = vmatprep.mubr.bf16.mxu0 0
        %1259 = vmatmul.mubr.bf16.gmra.mrb[0].mxu0 %v1182
        %v1260 = vpop.f32.mrb[0].mxu0
        %v1261 = vadd.f32 0.0, %v1260
        %v1262 = vpop.f32.mrb[0].mxu0
        %v1263 = vpop.f32.mrb[0].mxu0
        %v1264 = vadd.f32 0.0, %v1263
        %v1265 = vpop.f32.mrb[0].mxu0
        %1266 = vmatprep.mubr.bf16.mxu0 0
        %1267 = vmatmul.mubr.bf16.gmra.mrb[0].mxu0 %v1183
        %v1268 = vpop.f32.mrb[0].mxu0
        %v1269 = vadd.f32 0.0, %v1268
        %v1270 = vpop.f32.mrb[0].mxu0
        %v1271 = vpop.f32.mrb[0].mxu0
        %v1272 = vadd.f32 0.0, %v1271
        %v1273 = vpop.f32.mrb[0].mxu0
        %1274 = vmatprep.mubr.bf16.mxu0 0
        %1275 = vmatmul.mubr.bf16.gmra.mrb[0].mxu0 %v1184
        %v1276 = vpop.f32.mrb[0].mxu0
        %v1277 = vadd.f32 0.0, %v1276
        %v1278 = vpop.f32.mrb[0].mxu0
        %v1279 = vpop.f32.mrb[0].mxu0
        %v1280 = vadd.f32 0.0, %v1279
        %v1281 = vpop.f32.mrb[0].mxu0
        %1282 = vmatprep.mubr.bf16.mxu0 0
        %1283 = vmatmul.mubr.bf16.gmra.mrb[0].mxu0 %v1185
        %v1284 = vpop.f32.mrb[0].mxu0
        %v1285 = vadd.f32 0.0, %v1284
        %v1286 = vpop.f32.mrb[0].mxu0
        %v1287 = vpop.f32.mrb[0].mxu0
        %v1288 = vadd.f32 0.0, %v1287
        %v1289 = vpop.f32.mrb[0].mxu0
        %1290 = vdwg.mxu0
        %v1291 = vmul.f32 %v1229, 0.125
        %v1292 = vmul.f32 %v1232, 0.125
        %v1293 = vmul.f32 %v1237, 0.125
        %v1294 = vmul.f32 %v1240, 0.125
        %v1295 = vmul.f32 %v1245, 0.125
        %v1296 = vmul.f32 %v1248, 0.125
        %v1297 = vmul.f32 %v1253, 0.125
        %v1298 = vmul.f32 %v1256, 0.125
        %v1299 = vmul.f32 %v1261, 0.125
        %v1300 = vmul.f32 %v1264, 0.125
        %v1301 = vmul.f32 %v1269, 0.125
        %v1302 = vmul.f32 %v1272, 0.125
        %v1303 = vmul.f32 %v1277, 0.125
        %v1304 = vmul.f32 %v1280, 0.125
        %v1305 = vmul.f32 %v1285, 0.125
        %v1306 = vmul.f32 %v1288, 0.125
        %v1307 = vpack.c.bf16 %v1292, %v1291
        %v1308 = vpack.c.bf16 %v1294, %v1293
        %v1309 = vpack.c.bf16 %v1296, %v1295
        %v1310 = vpack.c.bf16 %v1298, %v1297
        %v1311 = vpack.c.bf16 %v1300, %v1299
        %v1312 = vpack.c.bf16 %v1302, %v1301
        %v1313 = vpack.c.bf16 %v1304, %v1303
        %v1314 = vpack.c.bf16 %v1306, %v1305
        %v1315 = vld [vmem:[%s457] sm:$0xf]
        %v1316 = vld [vmem:[%s457 + $0x4] sm:$0xf]
        %v1317 = vld [vmem:[%s457 + $0x8] sm:$0xf]
        %v1318 = vld [vmem:[%s457 + $0xc] sm:$0xf]
        %v1319 = vld [vmem:[%s457 + $0x10] sm:$0xf]
        %v1320 = vld [vmem:[%s457 + $0x14] sm:$0xf]
        %v1321 = vld [vmem:[%s457 + $0x18] sm:$0xf]
        %v1322 = vld [vmem:[%s457 + $0x1c] sm:$0xf]
        %v1323 = vld [vmem:[%s457 + $0x20] sm:$0xf]
        %v1324 = vld [vmem:[%s457 + $0x24] sm:$0xf]
        %v1325 = vld [vmem:[%s457 + $0x28] sm:$0xf]
        %v1326 = vld [vmem:[%s457 + $0x2c] sm:$0xf]
        %v1327 = vld [vmem:[%s457 + $0x30] sm:$0xf]
        %v1328 = vld [vmem:[%s457 + $0x34] sm:$0xf]
        %v1329 = vld [vmem:[%s457 + $0x38] sm:$0xf]
        %v1330 = vld [vmem:[%s457 + $0x3c] sm:$0xf]
        %v1331 = vld [vmem:[%s510] sm:$0x1]
        %v1333 = vlaneseq
        %v1334 = vshrl.u32 %v1333, 7
        %v1335 = vsub.s32 0, %v1334
        %v1336 = vrot.slane %v1331, %v1335
        %v1354 = vunpack.c.l.b16 %v1315
        %v1355 = vunpack.c.l.b16 %v1316
        %v1356 = vunpack.c.l.b16 %v1317
        %v1357 = vunpack.c.l.b16 %v1318
        %v1358 = vunpack.c.l.b16 %v1319
        %v1359 = vunpack.c.l.b16 %v1320
        %v1360 = vunpack.c.l.b16 %v1321
        %v1361 = vunpack.c.l.b16 %v1322
        %v1362 = vunpack.c.l.b16 %v1323
        %v1363 = vunpack.c.l.b16 %v1324
        %v1364 = vunpack.c.l.b16 %v1325
        %v1365 = vunpack.c.l.b16 %v1326
        %v1366 = vunpack.c.l.b16 %v1327
        %v1367 = vunpack.c.l.b16 %v1328
        %v1368 = vunpack.c.l.b16 %v1329
        %v1369 = vunpack.c.l.b16 %v1330
        %v1370 = vpack.c.b16 %v1355, %v1354
        %v1371 = vpack.c.b16 %v1357, %v1356
        %v1372 = vpack.c.b16 %v1359, %v1358
        %v1373 = vpack.c.b16 %v1361, %v1360
        %v1374 = vpack.c.b16 %v1363, %v1362
        %v1375 = vpack.c.b16 %v1365, %v1364
        %v1376 = vpack.c.b16 %v1367, %v1366
        %v1377 = vpack.c.b16 %v1369, %v1368
        %1386 = vmatprep.subr.bf16.mxu0 0
        %1387 = vmatpush1.bf16.msra.mxu0 %v1370
        %1388 = vmatprep.subr.bf16.mxu0 0
        %1389 = vmatpush1.bf16.msra.mxu0 %v1371
        %1390 = vmatprep.subr.bf16.mxu0 0
        %1391 = vmatpush1.bf16.msra.mxu0 %v1372
        %1392 = vmatprep.subr.bf16.mxu0 0
        %1393 = vmatpush1.bf16.msra.mxu0 %v1373
        %1394 = vmatprep.subr.bf16.mxu0 0
        %1395 = vmatpush1.bf16.msra.mxu0 %v1374
        %1396 = vmatprep.subr.bf16.mxu0 0
        %1397 = vmatpush1.bf16.msra.mxu0 %v1375
        %1398 = vmatprep.subr.bf16.mxu0 0
        %1399 = vmatpush1.bf16.msra.mxu0 %v1376
        %1400 = vmatprep.subr.bf16.mxu0 0
        %1401 = vmatpush1.bf16.msra.mxu0 %v1377
        %1402 = vmatprep.subr.bf16.mxu0 0
        %1403 = vmatpush1.bf16.msra.mxu0 0
        %1404 = vmatprep.subr.bf16.mxu0 0
        %1405 = vmatpush1.bf16.msra.mxu0 0
        %1406 = vmatprep.subr.bf16.mxu0 0
        %1407 = vmatpush1.bf16.msra.mxu0 0
        %1408 = vmatprep.subr.bf16.mxu0 0
        %1409 = vmatpush1.bf16.msra.mxu0 0
        %1410 = vmatprep.subr.bf16.mxu0 0
        %1411 = vmatpush1.bf16.msra.mxu0 0
        %1412 = vmatprep.subr.bf16.mxu0 0
        %1413 = vmatpush1.bf16.msra.mxu0 0
        %1414 = vmatprep.subr.bf16.mxu0 0
        %1415 = vmatpush1.bf16.msra.mxu0 0
        %1416 = vmatprep.subr.bf16.mxu0 0
        %1417 = vmatpush1.bf16.msra.mxu0 0
        %1418 = vmatprep.mubr.bf16.mxu0 0
        %1419 = vmatmul.mubr.bf16.gmra.mrb[0].mxu0 %v1307
        %v1420 = vpop.f32.mrb[0].mxu0
        %v1421 = vadd.f32 %v1336, %v1420
        %v1422 = vpop.f32.mrb[0].mxu0
        %v1423 = vpop.f32.mrb[0].mxu0
        %v1424 = vadd.f32 %v1336, %v1423
        %v1425 = vpop.f32.mrb[0].mxu0
        %1426 = vmatprep.mubr.bf16.mxu0 0
        %1427 = vmatmul.mubr.bf16.gmra.mrb[0].mxu0 %v1308
        %v1428 = vpop.f32.mrb[0].mxu0
        %v1429 = vadd.f32 %v1336, %v1428
        %v1430 = vpop.f32.mrb[0].mxu0
        %v1431 = vpop.f32.mrb[0].mxu0
        %v1432 = vadd.f32 %v1336, %v1431
        %v1433 = vpop.f32.mrb[0].mxu0
        %1434 = vmatprep.mubr.bf16.mxu0 0
        %1435 = vmatmul.mubr.bf16.gmra.mrb[0].mxu0 %v1309
        %v1436 = vpop.f32.mrb[0].mxu0
        %v1437 = vadd.f32 %v1336, %v1436
        %v1438 = vpop.f32.mrb[0].mxu0
        %v1439 = vpop.f32.mrb[0].mxu0
        %v1440 = vadd.f32 %v1336, %v1439
        %v1441 = vpop.f32.mrb[0].mxu0
        %1442 = vmatprep.mubr.bf16.mxu0 0
        %1443 = vmatmul.mubr.bf16.gmra.mrb[0].mxu0 %v1310
        %v1444 = vpop.f32.mrb[0].mxu0
        %v1445 = vadd.f32 %v1336, %v1444
        %v1446 = vpop.f32.mrb[0].mxu0
        %v1447 = vpop.f32.mrb[0].mxu0
        %v1448 = vadd.f32 %v1336, %v1447
        %v1449 = vpop.f32.mrb[0].mxu0
        %1450 = vmatprep.mubr.bf16.mxu0 0
        %1451 = vmatmul.mubr.bf16.gmra.mrb[0].mxu0 %v1311
        %v1452 = vpop.f32.mrb[0].mxu0
        %v1453 = vadd.f32 %v1336, %v1452
        %v1454 = vpop.f32.mrb[0].mxu0
        %v1455 = vpop.f32.mrb[0].mxu0
        %v1456 = vadd.f32 %v1336, %v1455
        %v1457 = vpop.f32.mrb[0].mxu0
        %1458 = vmatprep.mubr.bf16.mxu0 0
        %1459 = vmatmul.mubr.bf16.gmra.mrb[0].mxu0 %v1312
        %v1460 = vpop.f32.mrb[0].mxu0
        %v1461 = vadd.f32 %v1336, %v1460
        %v1462 = vpop.f32.mrb[0].mxu0
        %v1463 = vpop.f32.mrb[0].mxu0
        %v1464 = vadd.f32 %v1336, %v1463
        %v1465 = vpop.f32.mrb[0].mxu0
        %1466 = vmatprep.mubr.bf16.mxu0 0
        %1467 = vmatmul.mubr.bf16.gmra.mrb[0].mxu0 %v1313
        %v1468 = vpop.f32.mrb[0].mxu0
        %v1469 = vadd.f32 %v1336, %v1468
        %v1470 = vpop.f32.mrb[0].mxu0
        %v1471 = vpop.f32.mrb[0].mxu0
        %v1472 = vadd.f32 %v1336, %v1471
        %v1473 = vpop.f32.mrb[0].mxu0
        %1474 = vmatprep.mubr.bf16.mxu0 0
        %1475 = vmatmul.mubr.bf16.gmra.mrb[0].mxu0 %v1314
        %v1476 = vpop.f32.mrb[0].mxu0
        %v1477 = vadd.f32 %v1336, %v1476
        %v1478 = vpop.f32.mrb[0].mxu0
        %v1479 = vpop.f32.mrb[0].mxu0
        %v1480 = vadd.f32 %v1336, %v1479
        %v1481 = vpop.f32.mrb[0].mxu0
        %1482 = vdwg.mxu0
        %s1483 = scalar_lea.vmem [#allocation2], %s1121
        %v1484 = vld [vmem:[%s1483] sm:$0xff]
        %v1485 = vld [vmem:[%s1483 + $0x8] sm:$0xff]
        %v1486 = vld [vmem:[%s1483 + $0x10] sm:$0xff]
        %v1487 = vld [vmem:[%s1483 + $0x18] sm:$0xff]
        %v1488 = vld [vmem:[%s1483 + $0x20] sm:$0xff]
        %v1489 = vld [vmem:[%s1483 + $0x28] sm:$0xff]
        %v1490 = vld [vmem:[%s1483 + $0x30] sm:$0xff]
        %v1491 = vld [vmem:[%s1483 + $0x38] sm:$0xff]
        %v1492 = vld [vmem:[%s1483 + $0x40] sm:$0xff]
        %v1493 = vld [vmem:[%s1483 + $0x48] sm:$0xff]
        %v1494 = vld [vmem:[%s1483 + $0x50] sm:$0xff]
        %v1495 = vld [vmem:[%s1483 + $0x58] sm:$0xff]
        %v1496 = vld [vmem:[%s1483 + $0x60] sm:$0xff]
        %v1497 = vld [vmem:[%s1483 + $0x68] sm:$0xff]
        %v1498 = vld [vmem:[%s1483 + $0x70] sm:$0xff]
        %v1499 = vld [vmem:[%s1483 + $0x78] sm:$0xff]
        %v1500 = vmul.f32 %v1421, %v1421
        %v1501 = vmul.f32 %v1424, %v1424
        %v1502 = vmul.f32 %v1429, %v1429
        %v1503 = vmul.f32 %v1432, %v1432
        %v1504 = vmul.f32 %v1437, %v1437
        %v1505 = vmul.f32 %v1440, %v1440
        %v1506 = vmul.f32 %v1445, %v1445
        %v1507 = vmul.f32 %v1448, %v1448
        %v1508 = vmul.f32 %v1453, %v1453
        %v1509 = vmul.f32 %v1456, %v1456
        %v1510 = vmul.f32 %v1461, %v1461
        %v1511 = vmul.f32 %v1464, %v1464
        %v1512 = vmul.f32 %v1469, %v1469
        %v1513 = vmul.f32 %v1472, %v1472
        %v1514 = vmul.f32 %v1477, %v1477
        %v1515 = vmul.f32 %v1480, %v1480
        %v1516 = vmul.f32 %v1421, %v1500
        %v1517 = vmul.f32 %v1424, %v1501
        %v1518 = vmul.f32 %v1429, %v1502
        %v1519 = vmul.f32 %v1432, %v1503
        %v1520 = vmul.f32 %v1437, %v1504
        %v1521 = vmul.f32 %v1440, %v1505
        %v1522 = vmul.f32 %v1445, %v1506
        %v1523 = vmul.f32 %v1448, %v1507
        %v1524 = vmul.f32 %v1453, %v1508
        %v1525 = vmul.f32 %v1456, %v1509
        %v1526 = vmul.f32 %v1461, %v1510
        %v1527 = vmul.f32 %v1464, %v1511
        %v1528 = vmul.f32 %v1469, %v1512
        %v1529 = vmul.f32 %v1472, %v1513
        %v1530 = vmul.f32 %v1477, %v1514
        %v1531 = vmul.f32 %v1480, %v1515
        %v1532 = vmul.f32 %v1516, 0.044715
        %v1533 = vmul.f32 %v1517, 0.044715
        %v1534 = vmul.f32 %v1518, 0.044715
        %v1535 = vmul.f32 %v1519, 0.044715
        %v1536 = vmul.f32 %v1520, 0.044715
        %v1537 = vmul.f32 %v1521, 0.044715
        %v1538 = vmul.f32 %v1522, 0.044715
        %v1539 = vmul.f32 %v1523, 0.044715
        %v1540 = vmul.f32 %v1524, 0.044715
        %v1541 = vmul.f32 %v1525, 0.044715
        %v1542 = vmul.f32 %v1526, 0.044715
        %v1543 = vmul.f32 %v1527, 0.044715
        %v1544 = vmul.f32 %v1528, 0.044715
        %v1545 = vmul.f32 %v1529, 0.044715
        %v1546 = vmul.f32 %v1530, 0.044715
        %v1547 = vmul.f32 %v1531, 0.044715
        %v1548 = vadd.f32 %v1421, %v1532
        %v1549 = vadd.f32 %v1424, %v1533
        %v1550 = vadd.f32 %v1429, %v1534
        %v1551 = vadd.f32 %v1432, %v1535
        %v1552 = vadd.f32 %v1437, %v1536
        %v1553 = vadd.f32 %v1440, %v1537
        %v1554 = vadd.f32 %v1445, %v1538
        %v1555 = vadd.f32 %v1448, %v1539
        %v1556 = vadd.f32 %v1453, %v1540
        %v1557 = vadd.f32 %v1456, %v1541
        %v1558 = vadd.f32 %v1461, %v1542
        %v1559 = vadd.f32 %v1464, %v1543
        %v1560 = vadd.f32 %v1469, %v1544
        %v1561 = vadd.f32 %v1472, %v1545
        %v1562 = vadd.f32 %v1477, %v1546
        %v1563 = vadd.f32 %v1480, %v1547
        %v1564 = vmul.f32 %v1548, 0.7978846
        %v1565 = vmul.f32 %v1549, 0.7978846
        %v1566 = vmul.f32 %v1550, 0.7978846
        %v1567 = vmul.f32 %v1551, 0.7978846
        %v1568 = vmul.f32 %v1552, 0.7978846
        %v1569 = vmul.f32 %v1553, 0.7978846
        %v1570 = vmul.f32 %v1554, 0.7978846
        %v1571 = vmul.f32 %v1555, 0.7978846
        %v1572 = vmul.f32 %v1556, 0.7978846
        %v1573 = vmul.f32 %v1557, 0.7978846
        %v1574 = vmul.f32 %v1558, 0.7978846
        %v1575 = vmul.f32 %v1559, 0.7978846
        %v1576 = vmul.f32 %v1560, 0.7978846
        %v1577 = vmul.f32 %v1561, 0.7978846
        %v1578 = vmul.f32 %v1562, 0.7978846
        %v1579 = vmul.f32 %v1563, 0.7978846
        %v1580 = vtanh.pop %v1564
        %v1581 = vtanh.pop %v1565
        %v1582 = vtanh.pop %v1566
        %v1583 = vtanh.pop %v1567
        %v1584 = vtanh.pop %v1568
        %v1585 = vtanh.pop %v1569
        %v1586 = vtanh.pop %v1570
        %v1587 = vtanh.pop %v1571
        %v1588 = vtanh.pop %v1572
        %v1589 = vtanh.pop %v1573
        %v1590 = vtanh.pop %v1574
        %v1591 = vtanh.pop %v1575
        %v1592 = vtanh.pop %v1576
        %v1593 = vtanh.pop %v1577
        %v1594 = vtanh.pop %v1578
        %v1595 = vtanh.pop %v1579
        %v1596 = vadd.f32 %v1580, 1.0
        %v1597 = vadd.f32 %v1581, 1.0
        %v1598 = vadd.f32 %v1582, 1.0
        %v1599 = vadd.f32 %v1583, 1.0
        %v1600 = vadd.f32 %v1584, 1.0
        %v1601 = vadd.f32 %v1585, 1.0
        %v1602 = vadd.f32 %v1586, 1.0
        %v1603 = vadd.f32 %v1587, 1.0
        %v1604 = vadd.f32 %v1588, 1.0
        %v1605 = vadd.f32 %v1589, 1.0
        %v1606 = vadd.f32 %v1590, 1.0
        %v1607 = vadd.f32 %v1591, 1.0
        %v1608 = vadd.f32 %v1592, 1.0
        %v1609 = vadd.f32 %v1593, 1.0
        %v1610 = vadd.f32 %v1594, 1.0
        %v1611 = vadd.f32 %v1595, 1.0
        %v1612 = vmul.f32 %v1596, 0.5
        %v1613 = vmul.f32 %v1597, 0.5
        %v1614 = vmul.f32 %v1598, 0.5
        %v1615 = vmul.f32 %v1599, 0.5
        %v1616 = vmul.f32 %v1600, 0.5
        %v1617 = vmul.f32 %v1601, 0.5
        %v1618 = vmul.f32 %v1602, 0.5
        %v1619 = vmul.f32 %v1603, 0.5
        %v1620 = vmul.f32 %v1604, 0.5
        %v1621 = vmul.f32 %v1605, 0.5
        %v1622 = vmul.f32 %v1606, 0.5
        %v1623 = vmul.f32 %v1607, 0.5
        %v1624 = vmul.f32 %v1608, 0.5
        %v1625 = vmul.f32 %v1609, 0.5
        %v1626 = vmul.f32 %v1610, 0.5
        %v1627 = vmul.f32 %v1611, 0.5
        %v1628 = vmul.f32 %v1421, %v1612
        %v1629 = vmul.f32 %v1424, %v1613
        %v1630 = vmul.f32 %v1429, %v1614
        %v1631 = vmul.f32 %v1432, %v1615
        %v1632 = vmul.f32 %v1437, %v1616
        %v1633 = vmul.f32 %v1440, %v1617
        %v1634 = vmul.f32 %v1445, %v1618
        %v1635 = vmul.f32 %v1448, %v1619
        %v1636 = vmul.f32 %v1453, %v1620
        %v1637 = vmul.f32 %v1456, %v1621
        %v1638 = vmul.f32 %v1461, %v1622
        %v1639 = vmul.f32 %v1464, %v1623
        %v1640 = vmul.f32 %v1469, %v1624
        %v1641 = vmul.f32 %v1472, %v1625
        %v1642 = vmul.f32 %v1477, %v1626
        %v1643 = vmul.f32 %v1480, %v1627
        %v1644 = vadd.f32 %v1484, %v1628
        %v1645 = vadd.f32 %v1485, %v1629
        %v1646 = vadd.f32 %v1486, %v1630
        %v1647 = vadd.f32 %v1487, %v1631
        %v1648 = vadd.f32 %v1488, %v1632
        %v1649 = vadd.f32 %v1489, %v1633
        %v1650 = vadd.f32 %v1490, %v1634
        %v1651 = vadd.f32 %v1491, %v1635
        %v1652 = vadd.f32 %v1492, %v1636
        %v1653 = vadd.f32 %v1493, %v1637
        %v1654 = vadd.f32 %v1494, %v1638
        %v1655 = vadd.f32 %v1495, %v1639
        %v1656 = vadd.f32 %v1496, %v1640
        %v1657 = vadd.f32 %v1497, %v1641
        %v1658 = vadd.f32 %v1498, %v1642
        %v1659 = vadd.f32 %v1499, %v1643
        %1660 = vst [vmem:[%s1483] sm:$0xff] %v1644
        %1661 = vst [vmem:[%s1483 + $0x8] sm:$0xff] %v1645
        %1662 = vst [vmem:[%s1483 + $0x10] sm:$0xff] %v1646
        %1663 = vst [vmem:[%s1483 + $0x18] sm:$0xff] %v1647
        %1664 = vst [vmem:[%s1483 + $0x20] sm:$0xff] %v1648
        %1665 = vst [vmem:[%s1483 + $0x28] sm:$0xff] %v1649
        %1666 = vst [vmem:[%s1483 + $0x30] sm:$0xff] %v1650
        %1667 = vst [vmem:[%s1483 + $0x38] sm:$0xff] %v1651
        %1668 = vst [vmem:[%s1483 + $0x40] sm:$0xff] %v1652
        %1669 = vst [vmem:[%s1483 + $0x48] sm:$0xff] %v1653
        %1670 = vst [vmem:[%s1483 + $0x50] sm:$0xff] %v1654
        %1671 = vst [vmem:[%s1483 + $0x58] sm:$0xff] %v1655
        %1672 = vst [vmem:[%s1483 + $0x60] sm:$0xff] %v1656
        %1673 = vst [vmem:[%s1483 + $0x68] sm:$0xff] %v1657
        %1674 = vst [vmem:[%s1483 + $0x70] sm:$0xff] %v1658
        %1675 = vst [vmem:[%s1483 + $0x78] sm:$0xff] %v1659
        %p1676 = scmp.eq.s32.totalorder %s32, 1
        // Predicated region
        $region93: #{tpu_custom_call.1} parent=59 // pred_check
          %p1677 = pneg %p1676
        $region94: #{tpu_custom_call.1} parent=59 // pred_check_branch
          %1679 = sbr.rel (%p1677) target = $region96
        $region95: #{tpu_custom_call.1} parent=59 // pred_region
          %v1680 = vpack.c.bf16 %v1645, %v1644
          %v1681 = vpack.c.bf16 %v1647, %v1646
          %v1682 = vpack.c.bf16 %v1649, %v1648
          %v1683 = vpack.c.bf16 %v1651, %v1650
          %v1684 = vpack.c.bf16 %v1653, %v1652
          %v1685 = vpack.c.bf16 %v1655, %v1654
          %v1686 = vpack.c.bf16 %v1657, %v1656
          %v1687 = vpack.c.bf16 %v1659, %v1658
          %v1688 = vld [vmem:[#allocation13] sm:$0xf]
          %v1689 = vld [vmem:[#allocation13 + $0x4] sm:$0xf]
          %v1690 = vld [vmem:[#allocation13 + $0x8] sm:$0xf]
          %v1691 = vld [vmem:[#allocation13 + $0xc] sm:$0xf]
          %v1692 = vld [vmem:[#allocation13 + $0x10] sm:$0xf]
          %v1693 = vld [vmem:[#allocation13 + $0x14] sm:$0xf]
          %v1694 = vld [vmem:[#allocation13 + $0x18] sm:$0xf]
          %v1695 = vld [vmem:[#allocation13 + $0x1c] sm:$0xf]
          %v1696 = vld [vmem:[#allocation13 + $0x20] sm:$0xf]
          %v1697 = vld [vmem:[#allocation13 + $0x24] sm:$0xf]
          %v1698 = vld [vmem:[#allocation13 + $0x28] sm:$0xf]
          %v1699 = vld [vmem:[#allocation13 + $0x2c] sm:$0xf]
          %v1700 = vld [vmem:[#allocation13 + $0x30] sm:$0xf]
          %v1701 = vld [vmem:[#allocation13 + $0x34] sm:$0xf]
          %v1702 = vld [vmem:[#allocation13 + $0x38] sm:$0xf]
          %v1703 = vld [vmem:[#allocation13 + $0x3c] sm:$0xf]
          %v1704 = vld [vmem:[%s9] sm:$0x1]
          %v1706 = vlaneseq
          %v1707 = vshrl.u32 %v1706, 7
          %v1708 = vsub.s32 0, %v1707
          %v1709 = vrot.slane %v1704, %v1708
          %v1727 = vunpack.c.l.b16 %v1688
          %v1728 = vunpack.c.l.b16 %v1689
          %v1729 = vunpack.c.l.b16 %v1690
          %v1730 = vunpack.c.l.b16 %v1691
          %v1731 = vunpack.c.l.b16 %v1692
          %v1732 = vunpack.c.l.b16 %v1693
          %v1733 = vunpack.c.l.b16 %v1694
          %v1734 = vunpack.c.l.b16 %v1695
          %v1735 = vunpack.c.l.b16 %v1696
          %v1736 = vunpack.c.l.b16 %v1697
          %v1737 = vunpack.c.l.b16 %v1698
          %v1738 = vunpack.c.l.b16 %v1699
          %v1739 = vunpack.c.l.b16 %v1700
          %v1740 = vunpack.c.l.b16 %v1701
          %v1741 = vunpack.c.l.b16 %v1702
          %v1742 = vunpack.c.l.b16 %v1703
          %v1743 = vpack.c.b16 %v1728, %v1727
          %v1744 = vpack.c.b16 %v1730, %v1729
          %v1745 = vpack.c.b16 %v1732, %v1731
          %v1746 = vpack.c.b16 %v1734, %v1733
          %v1747 = vpack.c.b16 %v1736, %v1735
          %v1748 = vpack.c.b16 %v1738, %v1737
          %v1749 = vpack.c.b16 %v1740, %v1739
          %v1750 = vpack.c.b16 %v1742, %v1741
          %1759 = vmatprep.subr.bf16.mxu0 0
          %1760 = vmatpush1.bf16.msra.mxu0 %v1743
          %1761 = vmatprep.subr.bf16.mxu0 0
          %1762 = vmatpush1.bf16.msra.mxu0 %v1744
          %1763 = vmatprep.subr.bf16.mxu0 0
          %1764 = vmatpush1.bf16.msra.mxu0 %v1745
          %1765 = vmatprep.subr.bf16.mxu0 0
          %1766 = vmatpush1.bf16.msra.mxu0 %v1746
          %1767 = vmatprep.subr.bf16.mxu0 0
          %1768 = vmatpush1.bf16.msra.mxu0 %v1747
          %1769 = vmatprep.subr.bf16.mxu0 0
          %1770 = vmatpush1.bf16.msra.mxu0 %v1748
          %1771 = vmatprep.subr.bf16.mxu0 0
          %1772 = vmatpush1.bf16.msra.mxu0 %v1749
          %1773 = vmatprep.subr.bf16.mxu0 0
          %1774 = vmatpush1.bf16.msra.mxu0 %v1750
          %1775 = vmatprep.subr.bf16.mxu0 0
          %1776 = vmatpush1.bf16.msra.mxu0 0
          %1777 = vmatprep.subr.bf16.mxu0 0
          %1778 = vmatpush1.bf16.msra.mxu0 0
          %1779 = vmatprep.subr.bf16.mxu0 0
          %1780 = vmatpush1.bf16.msra.mxu0 0
          %1781 = vmatprep.subr.bf16.mxu0 0
          %1782 = vmatpush1.bf16.msra.mxu0 0
          %1783 = vmatprep.subr.bf16.mxu0 0
          %1784 = vmatpush1.bf16.msra.mxu0 0
          %1785 = vmatprep.subr.bf16.mxu0 0
          %1786 = vmatpush1.bf16.msra.mxu0 0
          %1787 = vmatprep.subr.bf16.mxu0 0
          %1788 = vmatpush1.bf16.msra.mxu0 0
          %1789 = vmatprep.subr.bf16.mxu0 0
          %1790 = vmatpush1.bf16.msra.mxu0 0
          %1791 = vmatprep.mubr.bf16.mxu0 0
          %1792 = vmatmul.mubr.bf16.gmra.mrb[0].mxu0 %v1680
          %v1793 = vpop.f32.mrb[0].mxu0
          %v1794 = vadd.f32 %v1709, %v1793
          %v1795 = vpop.f32.mrb[0].mxu0
          %v1796 = vpop.f32.mrb[0].mxu0
          %v1797 = vadd.f32 %v1709, %v1796
          %v1798 = vpop.f32.mrb[0].mxu0
          %1799 = vmatprep.mubr.bf16.mxu0 0
          %1800 = vmatmul.mubr.bf16.gmra.mrb[0].mxu0 %v1681
          %v1801 = vpop.f32.mrb[0].mxu0
          %v1802 = vadd.f32 %v1709, %v1801
          %v1803 = vpop.f32.mrb[0].mxu0
          %v1804 = vpop.f32.mrb[0].mxu0
          %v1805 = vadd.f32 %v1709, %v1804
          %v1806 = vpop.f32.mrb[0].mxu0
          %1807 = vmatprep.mubr.bf16.mxu0 0
          %1808 = vmatmul.mubr.bf16.gmra.mrb[0].mxu0 %v1682
          %v1809 = vpop.f32.mrb[0].mxu0
          %v1810 = vadd.f32 %v1709, %v1809
          %v1811 = vpop.f32.mrb[0].mxu0
          %v1812 = vpop.f32.mrb[0].mxu0
          %v1813 = vadd.f32 %v1709, %v1812
          %v1814 = vpop.f32.mrb[0].mxu0
          %1815 = vmatprep.mubr.bf16.mxu0 0
          %1816 = vmatmul.mubr.bf16.gmra.mrb[0].mxu0 %v1683
          %v1817 = vpop.f32.mrb[0].mxu0
          %v1818 = vadd.f32 %v1709, %v1817
          %v1819 = vpop.f32.mrb[0].mxu0
          %v1820 = vpop.f32.mrb[0].mxu0
          %v1821 = vadd.f32 %v1709, %v1820
          %v1822 = vpop.f32.mrb[0].mxu0
          %1823 = vmatprep.mubr.bf16.mxu0 0
          %1824 = vmatmul.mubr.bf16.gmra.mrb[0].mxu0 %v1684
          %v1825 = vpop.f32.mrb[0].mxu0
          %v1826 = vadd.f32 %v1709, %v1825
          %v1827 = vpop.f32.mrb[0].mxu0
          %v1828 = vpop.f32.mrb[0].mxu0
          %v1829 = vadd.f32 %v1709, %v1828
          %v1830 = vpop.f32.mrb[0].mxu0
          %1831 = vmatprep.mubr.bf16.mxu0 0
          %1832 = vmatmul.mubr.bf16.gmra.mrb[0].mxu0 %v1685
          %v1833 = vpop.f32.mrb[0].mxu0
          %v1834 = vadd.f32 %v1709, %v1833
          %v1835 = vpop.f32.mrb[0].mxu0
          %v1836 = vpop.f32.mrb[0].mxu0
          %v1837 = vadd.f32 %v1709, %v1836
          %v1838 = vpop.f32.mrb[0].mxu0
          %1839 = vmatprep.mubr.bf16.mxu0 0
          %1840 = vmatmul.mubr.bf16.gmra.mrb[0].mxu0 %v1686
          %v1841 = vpop.f32.mrb[0].mxu0
          %v1842 = vadd.f32 %v1709, %v1841
          %v1843 = vpop.f32.mrb[0].mxu0
          %v1844 = vpop.f32.mrb[0].mxu0
          %v1845 = vadd.f32 %v1709, %v1844
          %v1846 = vpop.f32.mrb[0].mxu0
          %1847 = vmatprep.mubr.bf16.mxu0 0
          %1848 = vmatmul.mubr.bf16.gmra.mrb[0].mxu0 %v1687
          %v1849 = vpop.f32.mrb[0].mxu0
          %v1850 = vadd.f32 %v1709, %v1849
          %v1851 = vpop.f32.mrb[0].mxu0
          %v1852 = vpop.f32.mrb[0].mxu0
          %v1853 = vadd.f32 %v1709, %v1852
          %v1854 = vpop.f32.mrb[0].mxu0
          %1855 = vdwg.mxu0
          %v1856 = vpack.c.bf16 %v1797, %v1794
          %v1857 = vpack.c.bf16 %v1805, %v1802
          %v1858 = vpack.c.bf16 %v1813, %v1810
          %v1859 = vpack.c.bf16 %v1821, %v1818
          %v1860 = vpack.c.bf16 %v1829, %v1826
          %v1861 = vpack.c.bf16 %v1837, %v1834
          %v1862 = vpack.c.bf16 %v1845, %v1842
          %v1863 = vpack.c.bf16 %v1853, %v1850
          %v1872 = vunpack.c.l.b16 %v1856
          %v1873 = vunpack.c.h.b16 %v1856
          %v1874 = vunpack.c.l.b16 %v1857
          %v1875 = vunpack.c.h.b16 %v1857
          %v1876 = vunpack.c.l.b16 %v1858
          %v1877 = vunpack.c.h.b16 %v1858
          %v1878 = vunpack.c.l.b16 %v1859
          %v1879 = vunpack.c.h.b16 %v1859
          %v1880 = vunpack.c.l.b16 %v1860
          %v1881 = vunpack.c.h.b16 %v1860
          %v1882 = vunpack.c.l.b16 %v1861
          %v1883 = vunpack.c.h.b16 %v1861
          %v1884 = vunpack.c.l.b16 %v1862
          %v1885 = vunpack.c.h.b16 %v1862
          %v1886 = vunpack.c.l.b16 %v1863
          %v1887 = vunpack.c.h.b16 %v1863
          %v1888 = vpack.c.b16 %v1872, %v1872
          %v1889 = vpack.c.b16 %v1873, %v1873
          %v1890 = vpack.c.b16 %v1874, %v1874
          %v1891 = vpack.c.b16 %v1875, %v1875
          %v1892 = vpack.c.b16 %v1876, %v1876
          %v1893 = vpack.c.b16 %v1877, %v1877
          %v1894 = vpack.c.b16 %v1878, %v1878
          %v1895 = vpack.c.b16 %v1879, %v1879
          %v1896 = vpack.c.b16 %v1880, %v1880
          %v1897 = vpack.c.b16 %v1881, %v1881
          %v1898 = vpack.c.b16 %v1882, %v1882
          %v1899 = vpack.c.b16 %v1883, %v1883
          %v1900 = vpack.c.b16 %v1884, %v1884
          %v1901 = vpack.c.b16 %v1885, %v1885
          %v1902 = vpack.c.b16 %v1886, %v1886
          %v1903 = vpack.c.b16 %v1887, %v1887
          %s1920 = sshra.s32 %s1121, 3
          %s1921 = sand.u32 %s1121, 7
          %s1922 = smul.addr %s1920, 4
          %s1923 = scalar_lea.vmem [#allocation15], %s1922
          %1924 = vst [vmem:[%s1923] sm:$0xf] %v1888
          %1925 = vst [vmem:[%s1923 + $0x4] sm:$0xf] %v1889
          %1926 = vst [vmem:[%s1923 + $0x8] sm:$0xf] %v1890
          %1927 = vst [vmem:[%s1923 + $0xc] sm:$0xf] %v1891
          %1928 = vst [vmem:[%s1923 + $0x10] sm:$0xf] %v1892
          %1929 = vst [vmem:[%s1923 + $0x14] sm:$0xf] %v1893
          %1930 = vst [vmem:[%s1923 + $0x18] sm:$0xf] %v1894
          %1931 = vst [vmem:[%s1923 + $0x1c] sm:$0xf] %v1895
          %1932 = vst [vmem:[%s1923 + $0x20] sm:$0xf] %v1896
          %1933 = vst [vmem:[%s1923 + $0x24] sm:$0xf] %v1897
          %1934 = vst [vmem:[%s1923 + $0x28] sm:$0xf] %v1898
          %1935 = vst [vmem:[%s1923 + $0x2c] sm:$0xf] %v1899
          %1936 = vst [vmem:[%s1923 + $0x30] sm:$0xf] %v1900
          %1937 = vst [vmem:[%s1923 + $0x34] sm:$0xf] %v1901
          %1938 = vst [vmem:[%s1923 + $0x38] sm:$0xf] %v1902
          %1939 = vst [vmem:[%s1923 + $0x3c] sm:$0xf] %v1903
        $region96: #{tpu_custom_call.1} parent=59 // pred_fallthru
          _
        // Predicated region
        $region97: #{tpu_custom_call.1} parent=59 // pred_check
          %p1940 = pneg %p288
        $region98: #{tpu_custom_call.1} parent=59 // pred_check_branch
          %1942 = sbr.rel (%p1940) target = $region100
        $region99: #{tpu_custom_call.1} parent=59 // pred_region
          %s1944 = ssub.s32 1024, 1024
          %1945 = vsyncadd [#allocation6], %s1944
          %s1946 = sshll.u32 [#allocation15], 4
          %s1947 = int_to_ptr.vmem [resolvable:$true] %s1946
          %1952 = dma.vmem_to_hbm [thread:$0]  %s1947, 1024, %s10, [#allocation6], 64, 64, 4
        $region100: #{tpu_custom_call.1} parent=59 // pred_fallthru
          _
        // Predicated region
        $region101: #{tpu_custom_call.1} parent=59 // pred_check
          %p1953 = pneg %p288
        $region102: #{tpu_custom_call.1} parent=59 // pred_check_branch
          %1955 = sbr.rel (%p1953) target = $region104
        $region103: #{tpu_custom_call.1} parent=59 // pred_region
          %1956 = dma.done [#allocation6], 1024
        $region104: #{tpu_custom_call.1} parent=59 // pred_fallthru
          _
      $region60: #{tpu_custom_call.1} parent=5 // pred_fallthru
        _
      %p1957 = scmp.le.s32.totalorder 2, %s23
      // Predicated region
      $region105: #{tpu_custom_call.1} parent=5 // pred_check
        %p1958 = pneg %p1957
      $region106: #{tpu_custom_call.1} parent=5 // pred_check_branch
        %1960 = sbr.rel (%p1958) target = $region108
      $region107: #{tpu_custom_call.1} parent=5 // pred_region
        %s1961 = ssub.s32 %s23, 2
      $region108: #{tpu_custom_call.1} parent=5 // pred_fallthru
        _
    $region6: #{tpu_custom_call.1} parent=1 // loop_footer
      %s27 = sadd.s32 1, %s23
    $region7: #{tpu_custom_call.1} parent=1 // loop_footer_branch
      %22 = sbr.rel target = $region3
    $region8: #{tpu_custom_call.1} parent=1 // loop_exit
      _
    %1962 = vsyncpa [#allocation5], 1
    %s1963 = scalar_lea.sflag [#allocation5], 1
    %1964 = vsyncpa %s1963, 1
    %1965 = vsyncpa [#allocation8], 1
    %1966 = vsyncpa [#allocation11], 1
    %s1967 = scalar_lea.sflag [#allocation11], 1
    %1968 = vsyncpa %s1967, 1
    %1969 = vsyncpa [#allocation14], 1
    %1970 = vsyncpa [#allocation6], 1
    %s1971 = scalar_lea.sflag [#allocation6], 1
    %1972 = vsyncpa %s1971, 1

</llo_original>
